<compile_context>
chip_gen: v7x
topology: tpu7x:2x2x1
jax: 0.10.0
libtpu: 0.0.40
codegen_flags: <defaults>
</compile_context>

<pallas_src>
import functools

import jax
import jax.numpy as jnp
from jax.experimental import pallas as pl
from jax.experimental.pallas import tpu as pltpu

BN_EPS = 1e-5
LANE = 128
FOLD_K_MAX = 1024                      # fold kh*kw taps while kh*kw*C <= this
TILE_BYTES_BUDGET = 6 * 1024 * 1024    # per-tile compute buffers (acc + lhs + y)


def _round_up(x, m):
    return ((x + m - 1) // m) * m


def _default_vmem_limit():
    """Scoped-VMEM request derived from the actual chip (fallback: 32 MiB)."""
    try:
        cap = getattr(pltpu.get_tpu_info(), "vmem_capacity_bytes", None)
        if cap:
            return int(min(int(cap) * 3 // 4, 96 * 1024 * 1024))
    except Exception:
        pass
    return 32 * 1024 * 1024


VMEM_LIMIT = _default_vmem_limit()


def _pick_tile_h(ho, wo, n_pad, k_total):
    """Largest divisor of ho whose row tile fits the VMEM byte budget.

    rows = tile_h * wo must be a multiple of 16 (bf16 sublane tiling of the
    2-D output block) unless the tile covers the whole (ho*wo) extent.
    """
    # f32 acc + double-buffered bf16 y + bf16 folded LHS (and its taps).
    per_row = n_pad * 4 + 2 * n_pad * 2 + 2 * k_total * 2
    max_rows = max(16, TILE_BYTES_BUDGET // max(per_row, 1))
    best = None
    for d in range(1, ho + 1):
        if ho % d:
            continue
        rows = d * wo
        if rows % 16 == 0 and rows <= max_rows:
            best = d
    if best is None:
        best = ho   # full-extent block is always layout-legal
    return best


def _pick_tile_rows(m, base, max_rows=4096):
    """Grow the pass-2 row tile (divides m, multiple of 16 or full extent)."""
    tile = base
    while m % (tile * 2) == 0 and tile * 2 <= max_rows:
        tile *= 2
    if tile % 16 != 0 and tile != m:
        tile = m
    return tile


def _make_conv_stats_kernel(kh, kw, sh, sw, tile_h, wo, c, n_pad, fold):
    """Pass 1: conv tile as MXU matmul(s) + per-tile per-channel sum/sumsq."""
    rows = tile_h * wo

    def load_tap(x_ref, row0, i, j):
        if sh == 1 and sw == 1:
            return x_ref[pl.ds(row0 + i, tile_h), pl.ds(j, wo), :]
        # Strided ref load: avoids loading sh*sw more data + a VPU/XLU reshuffle.
        return x_ref[pl.ds(row0 + i, tile_h, stride=sh),
                     pl.ds(j, wo, stride=sw), :]

    def kernel(x_ref, w_ref, y_ref, s_ref):
        # x_ref : (Hp, Wp, C)   padded image of this batch element (bf16, resident)
        # w_ref : folded   -> (kh*kw*C, Npad)   (bf16)
        #         unfolded -> (kh*kw, C, Npad)  (bf16)
        # y_ref : (rows, Npad)  conv output tile (bf16, lane-dense)
        # s_ref : (2, Npad)     this (batch, row-tile)'s [sum; sumsq] partials (f32)
        t = pl.program_id(1)
        row0 = pl.multiple_of(t * (tile_h * sh), tile_h * sh)

        if fold:
            # Build the (rows, kh*kw*C) LHS in VMEM and issue ONE MXU matmul.
            taps = []
            for i in range(kh):
                for j in range(kw):
                    taps.append(load_tap(x_ref, row0, i, j))
            # Feature order (i, j, c) matches the wrapper's weight reshape.
            lhs = jnp.concatenate(taps, axis=-1).reshape(rows, kh * kw * c)
            acc = jnp.dot(lhs, w_ref[...], preferred_element_type=jnp.float32)
        else:
            acc = jnp.zeros((rows, n_pad), jnp.float32)
            for i in range(kh):
                for j in range(kw):
                    xs = load_tap(x_ref, row0, i, j).reshape(rows, c)
                    acc = acc + jnp.dot(xs, w_ref[i * kw + j],
                                        preferred_element_type=jnp.float32)

        y_bf = acc.astype(jnp.bfloat16)
        y_ref[...] = y_bf                       # 2-D, full-lane unmasked stores

        # BatchNorm batch statistics (f32) of the values actually stored.
        yf = y_bf.astype(jnp.float32)
        su = jnp.sum(yf, axis=0, keepdims=True)
        ss = jnp.sum(yf * yf, axis=0, keepdims=True)
        s_ref[...] = jnp.concatenate([su, ss], axis=0)

    return kernel


def _bn_prelu_kernel(y_ref, scale_ref, shift_ref, alpha_ref, o_ref):
    """Pass 2: z = y*scale + shift (folded BN affine), then per-channel PReLU."""
    z = y_ref[...].astype(jnp.float32) * scale_ref[...] + shift_ref[...]
    o_ref[...] = jnp.where(z > 0, z, alpha_ref[...] * z).astype(o_ref.dtype)


@functools.partial(jax.jit, static_argnames=("kernel", "stride", "padding"))
def conv_block_forward(x, weight, gamma, beta, alpha,
                       kernel=(3, 3), stride=(1, 1), padding=(1, 1)):
    """x: [B, in_c, H, W] (NCHW). weight: [out_c, in_c, kh, kw]. Returns NCHW f32."""
    # TODO(synk): grouped conv (groups > 1) and BatchNorm running-stat updates are
    # not implemented in this fused path (module defaults: groups=1, batch stats).
    b, c, h, w = x.shape
    out_c, in_c, kh, kw = weight.shape
    assert in_c == c and (kh, kw) == kernel
    sh, sw = stride
    ph, pw = padding

    hp, wp = h + 2 * ph, w + 2 * pw
    ho = (hp - kh) // sh + 1
    wo = (wp - kw) // sw + 1
    n_pad = _round_up(out_c, LANE)          # lane-dense output channels
    k_total = kh * kw * c
    fold = k_total <= FOLD_K_MAX

    # NHWC, spatially padded, bf16 MXU operands (accumulation stays f32).
    xp = jnp.pad(x, ((0, 0), (0, 0), (ph, ph), (pw, pw)))
    xp = xp.transpose(0, 2, 3, 1).astype(jnp.bfloat16)              # [B,Hp,Wp,C]
    w2 = weight.transpose(2, 3, 1, 0)                               # [kh,kw,C,out_c]
    if fold:
        w2 = w2.reshape(k_total, out_c)
        w2 = jnp.pad(w2, ((0, 0), (0, n_pad - out_c))).astype(jnp.bfloat16)
        w_spec = pl.BlockSpec((k_total, n_pad), lambda bi, ti: (0, 0))
    else:
        w2 = w2.reshape(kh * kw, c, out_c)
        w2 = jnp.pad(w2, ((0, 0), (0, 0), (0, n_pad - out_c))).astype(jnp.bfloat16)
        w_spec = pl.BlockSpec((kh * kw, c, n_pad), lambda bi, ti: (0, 0, 0))

    tile_h = _pick_tile_h(ho, wo, n_pad, k_total)
    n_ht = ho // tile_h
    rows = tile_h * wo
    m_rows = b * ho * wo

    conv_kernel = _make_conv_stats_kernel(kh, kw, sh, sw, tile_h, wo, c, n_pad, fold)

    # Advisory cost: real (unpadded) flops, actual HBM traffic incl. the y write.
    flops = 2 * b * ho * wo * kh * kw * c * out_c
    bytes_accessed = (xp.size * 2 + w2.size * 2
                      + m_rows * n_pad * 2 + b * n_ht * 2 * n_pad * 4)

    # TODO(synk): for very large images on v7x (64 MiB VMEM) the resident padded
    # image should be blocked over H with a (tile_h-1)*sh+kh row halo window
    # (pl.Element offsets / manual DMA); unnecessary at these sizes.
    y, stats = pl.pallas_call(
        conv_kernel,
        grid=(b, n_ht),
        in_specs=[
            # Full padded image of one batch element; revisited (not re-fetched)
            # across its row tiles, double-buffered across batch elements.
            pl.BlockSpec((None, hp, wp, c), lambda bi, ti: (bi, 0, 0, 0)),
            w_spec,
        ],
        out_specs=(
            pl.BlockSpec((None, rows, n_pad), lambda bi, ti: (bi, ti, 0)),
            pl.BlockSpec((None, None, 2, n_pad), lambda bi, ti: (bi, ti, 0, 0)),
        ),
        out_shape=(
            jax.ShapeDtypeStruct((b, ho * wo, n_pad), jnp.bfloat16),
            jax.ShapeDtypeStruct((b, n_ht, 2, n_pad), jnp.float32),
        ),
        compiler_params=pltpu.CompilerParams(
            dimension_semantics=("parallel", "parallel"),
            vmem_limit_bytes=VMEM_LIMIT),
        cost_estimate=pl.CostEstimate(
            flops=flops, transcendentals=0, bytes_accessed=bytes_accessed),
    )(xp, w2)

    # Fold training-mode BatchNorm2d (biased variance over N*H*W) into a
    # per-channel affine z = y*scale + shift.  Tiny per-channel JAX op.
    m_total = jnp.float32(b * ho * wo)
    tot = jnp.sum(stats, axis=(0, 1))                         # [2, Npad]
    mean = tot[0] / m_total
    var = jnp.maximum(tot[1] / m_total - mean * mean, 0.0)
    rstd = jax.lax.rsqrt(var + BN_EPS)
    gamma_p = jnp.pad(gamma.astype(jnp.float32), (0, n_pad - out_c))
    beta_p = jnp.pad(beta.astype(jnp.float32), (0, n_pad - out_c))
    alpha_p = jnp.pad(alpha.astype(jnp.float32), (0, n_pad - out_c))
    scale = (gamma_p * rstd).reshape(1, n_pad)
    shift = (beta_p - mean * gamma_p * rstd).reshape(1, n_pad)
    alpha_p = alpha_p.reshape(1, n_pad)

    y2 = y.reshape(m_rows, n_pad)                             # contiguous, free
    tile_m = _pick_tile_rows(m_rows, rows)

    out2 = pl.pallas_call(
        _bn_prelu_kernel,
        grid=(m_rows // tile_m,),
        in_specs=[
            pl.BlockSpec((tile_m, n_pad), lambda i: (i, 0)),
            pl.BlockSpec((1, n_pad), lambda i: (0, 0)),
            pl.BlockSpec((1, n_pad), lambda i: (0, 0)),
            pl.BlockSpec((1, n_pad), lambda i: (0, 0)),
        ],
        out_specs=pl.BlockSpec((tile_m, n_pad), lambda i: (i, 0)),
        out_shape=jax.ShapeDtypeStruct((m_rows, n_pad), jnp.float32),
        compiler_params=pltpu.CompilerParams(
            dimension_semantics=("parallel",),
            vmem_limit_bytes=VMEM_LIMIT),
    )(y2, scale, shift, alpha_p)

    out = out2.reshape(b, ho, wo, n_pad)[..., :out_c]
    # NHWC -> NCHW for PyTorch parity only.  If the consumer accepts
    # channels-last, return `out` directly and skip this extra HBM pass.
    return out.transpose(0, 3, 1, 2)


def _reference(x, weight, gamma, beta, alpha, stride, padding):
    # Mirrors the kernel's quantization points: bf16 MXU operands (f32 accum)
    # and a bf16 intermediate conv activation (BN statistics in f32).
    xb = x.astype(jnp.bfloat16).astype(jnp.float32)
    wb = weight.astype(jnp.bfloat16).astype(jnp.float32)
    y = jax.lax.conv_general_dilated(
        xb, wb, window_strides=stride,
        padding=[(padding[0], padding[0]), (padding[1], padding[1])],
        dimension_numbers=("NCHW", "OIHW", "NCHW"),
        precision=jax.lax.Precision.HIGHEST)
    y = y.astype(jnp.bfloat16).astype(jnp.float32)
    mean = jnp.mean(y, axis=(0, 2, 3), keepdims=True)
    var = jnp.mean((y - mean) ** 2, axis=(0, 2, 3), keepdims=True)
    yn = (y - mean) * jax.lax.rsqrt(var + BN_EPS)
    yn = yn * gamma.reshape(1, -1, 1, 1) + beta.reshape(1, -1, 1, 1)
    a = alpha.reshape(1, -1, 1, 1)
    return jnp.where(yn > 0, yn, a * yn)


if __name__ == "__main__":
    key = jax.random.PRNGKey(0)
    kx, kw_ = jax.random.split(key)

    B, in_c, H, W = 2, 4, 16, 16
    out_c = 8
    kernel, stride, padding = (3, 3), (1, 1), (1, 1)

    x = jax.random.normal(kx, (B, in_c, H, W), dtype=jnp.float32)
    weight = jax.random.normal(kw_, (out_c, in_c, *kernel), dtype=jnp.float32) * 0.1
    gamma = jnp.ones((out_c,), jnp.float32)          # BatchNorm2d default weight
    beta = jnp.zeros((out_c,), jnp.float32)          # BatchNorm2d default bias
    alpha = jnp.full((out_c,), 0.25, jnp.float32)    # PReLU default slope

    out = conv_block_forward(x, weight, gamma, beta, alpha,
                             kernel=kernel, stride=stride, padding=padding)
    out = jax.block_until_ready(out)

    ref = _reference(x, weight, gamma, beta, alpha, stride, padding)
    assert out.shape == (B, out_c, H, W)
    # Tolerance accounts for the bf16 intermediate activation (both sides
    # quantized identically; only accumulation-order/rounding-boundary diffs).
    assert jnp.allclose(out, ref, rtol=2e-2, atol=2e-2), "mismatch vs. reference"

    print("KERNEL_OK")
</pallas_src>

<mosaic_0001>
module attributes {stable_mosaic.version = 11 : i64} {
  func.func @kernel(%arg0: i32, %arg1: i32, %arg2: memref<1x18x18x4xbf16, #tpu.memory_space<vmem>>, %arg3: memref<36x128xbf16, #tpu.memory_space<vmem>>, %arg4: memref<1x256x128xbf16, #tpu.memory_space<vmem>>, %arg5: memref<1x1x2x128xf32, #tpu.memory_space<vmem>>) attributes {dimension_semantics = [#tpu.dimension_semantics<parallel>, #tpu.dimension_semantics<parallel>], iteration_bounds = array<i64: 2, 1>, scalar_prefetch = 0 : i64, scratch_operands = 0 : i64, tpu.core_type = #tpu.core_type<tc>, window_params = [{transform_indices = @transform_0, window_bounds = array<i64: 1, 18, 18, 4>}, {pipeline_mode = #tpu.pipeline_mode<synchronous>, transform_indices = @transform_1, window_bounds = array<i64: 36, 128>}, {transform_indices = @transform_2, window_bounds = array<i64: 1, 256, 128>}, {transform_indices = @transform_3, window_bounds = array<i64: 1, 1, 2, 128>}]} {
    %c16_i32 = arith.constant 16 : i32
    %0 = arith.muli %arg1, %c16_i32 : i32
    %1 = tpu.assume_multiple %0, 16 : i32
    %c0_i32 = arith.constant 0 : i32
    %2 = arith.addi %1, %c0_i32 : i32
    %c0 = arith.constant 0 : index
    %3 = arith.index_cast %2 : i32 to index
    %c0_0 = arith.constant 0 : index
    %c0_1 = arith.constant 0 : index
    %4 = vector.load %arg2[%c0, %3, %c0_0, %c0_1] : memref<1x18x18x4xbf16, #tpu.memory_space<vmem>>, vector<1x16x16x4xbf16>
    %5 = vector.shape_cast %4 : vector<1x16x16x4xbf16> to vector<16x16x4xbf16>
    %c0_i32_2 = arith.constant 0 : i32
    %6 = arith.addi %1, %c0_i32_2 : i32
    %c0_3 = arith.constant 0 : index
    %7 = arith.index_cast %6 : i32 to index
    %c1 = arith.constant 1 : index
    %c0_4 = arith.constant 0 : index
    %8 = vector.load %arg2[%c0_3, %7, %c1, %c0_4] : memref<1x18x18x4xbf16, #tpu.memory_space<vmem>>, vector<1x16x16x4xbf16>
    %9 = vector.shape_cast %8 : vector<1x16x16x4xbf16> to vector<16x16x4xbf16>
    %c0_i32_5 = arith.constant 0 : i32
    %10 = arith.addi %1, %c0_i32_5 : i32
    %c0_6 = arith.constant 0 : index
    %11 = arith.index_cast %10 : i32 to index
    %c2 = arith.constant 2 : index
    %c0_7 = arith.constant 0 : index
    %12 = vector.load %arg2[%c0_6, %11, %c2, %c0_7] : memref<1x18x18x4xbf16, #tpu.memory_space<vmem>>, vector<1x16x16x4xbf16>
    %13 = vector.shape_cast %12 : vector<1x16x16x4xbf16> to vector<16x16x4xbf16>
    %c1_i32 = arith.constant 1 : i32
    %14 = arith.addi %1, %c1_i32 : i32
    %c0_8 = arith.constant 0 : index
    %15 = arith.index_cast %14 : i32 to index
    %c0_9 = arith.constant 0 : index
    %c0_10 = arith.constant 0 : index
    %16 = vector.load %arg2[%c0_8, %15, %c0_9, %c0_10] : memref<1x18x18x4xbf16, #tpu.memory_space<vmem>>, vector<1x16x16x4xbf16>
    %17 = vector.shape_cast %16 : vector<1x16x16x4xbf16> to vector<16x16x4xbf16>
    %c1_i32_11 = arith.constant 1 : i32
    %18 = arith.addi %1, %c1_i32_11 : i32
    %c0_12 = arith.constant 0 : index
    %19 = arith.index_cast %18 : i32 to index
    %c1_13 = arith.constant 1 : index
    %c0_14 = arith.constant 0 : index
    %20 = vector.load %arg2[%c0_12, %19, %c1_13, %c0_14] : memref<1x18x18x4xbf16, #tpu.memory_space<vmem>>, vector<1x16x16x4xbf16>
    %21 = vector.shape_cast %20 : vector<1x16x16x4xbf16> to vector<16x16x4xbf16>
    %c1_i32_15 = arith.constant 1 : i32
    %22 = arith.addi %1, %c1_i32_15 : i32
    %c0_16 = arith.constant 0 : index
    %23 = arith.index_cast %22 : i32 to index
    %c2_17 = arith.constant 2 : index
    %c0_18 = arith.constant 0 : index
    %24 = vector.load %arg2[%c0_16, %23, %c2_17, %c0_18] : memref<1x18x18x4xbf16, #tpu.memory_space<vmem>>, vector<1x16x16x4xbf16>
    %25 = vector.shape_cast %24 : vector<1x16x16x4xbf16> to vector<16x16x4xbf16>
    %c2_i32 = arith.constant 2 : i32
    %26 = arith.addi %1, %c2_i32 : i32
    %c0_19 = arith.constant 0 : index
    %27 = arith.index_cast %26 : i32 to index
    %c0_20 = arith.constant 0 : index
    %c0_21 = arith.constant 0 : index
    %28 = vector.load %arg2[%c0_19, %27, %c0_20, %c0_21] : memref<1x18x18x4xbf16, #tpu.memory_space<vmem>>, vector<1x16x16x4xbf16>
    %29 = vector.shape_cast %28 : vector<1x16x16x4xbf16> to vector<16x16x4xbf16>
    %c2_i32_22 = arith.constant 2 : i32
    %30 = arith.addi %1, %c2_i32_22 : i32
    %c0_23 = arith.constant 0 : index
    %31 = arith.index_cast %30 : i32 to index
    %c1_24 = arith.constant 1 : index
    %c0_25 = arith.constant 0 : index
    %32 = vector.load %arg2[%c0_23, %31, %c1_24, %c0_25] : memref<1x18x18x4xbf16, #tpu.memory_space<vmem>>, vector<1x16x16x4xbf16>
    %33 = vector.shape_cast %32 : vector<1x16x16x4xbf16> to vector<16x16x4xbf16>
    %c2_i32_26 = arith.constant 2 : i32
    %34 = arith.addi %1, %c2_i32_26 : i32
    %c0_27 = arith.constant 0 : index
    %35 = arith.index_cast %34 : i32 to index
    %c2_28 = arith.constant 2 : index
    %c0_29 = arith.constant 0 : index
    %36 = vector.load %arg2[%c0_27, %35, %c2_28, %c0_29] : memref<1x18x18x4xbf16, #tpu.memory_space<vmem>>, vector<1x16x16x4xbf16>
    %37 = vector.shape_cast %36 : vector<1x16x16x4xbf16> to vector<16x16x4xbf16>
    %38 = tpu.concatenate %5, %9, %13, %17, %21, %25, %29, %33, %37 in 2 : vector<16x16x4xbf16>, vector<16x16x4xbf16>, vector<16x16x4xbf16>, vector<16x16x4xbf16>, vector<16x16x4xbf16>, vector<16x16x4xbf16>, vector<16x16x4xbf16>, vector<16x16x4xbf16>, vector<16x16x4xbf16> -> vector<16x16x36xbf16>
    %39 = vector.shape_cast %38 : vector<16x16x36xbf16> to vector<256x36xbf16>
    %c0_30 = arith.constant 0 : index
    %c0_31 = arith.constant 0 : index
    %40 = vector.load %arg3[%c0_30, %c0_31] : memref<36x128xbf16, #tpu.memory_space<vmem>>, vector<36x128xbf16>
    %cst = arith.constant dense<0.000000e+00> : vector<256x128xf32>
    %41 = tpu.matmul %39, %40, %cst {dimension_numbers = #tpu.dot_dimension_numbers<[1], [0], [0], [1], [0, 0, 1, 1], [], []>} : vector<256x36xbf16>, vector<36x128xbf16>, vector<256x128xf32> -> vector<256x128xf32>
    %42 = arith.truncf %41 : vector<256x128xf32> to vector<256x128xbf16>
    %c0_32 = arith.constant 0 : index
    %c0_33 = arith.constant 0 : index
    %c0_34 = arith.constant 0 : index
    %43 = vector.load %arg4[%c0_32, %c0_33, %c0_34] : memref<1x256x128xbf16, #tpu.memory_space<vmem>>, vector<1x256x128xbf16>
    %44 = vector.shape_cast %43 : vector<1x256x128xbf16> to vector<256x128xbf16>
    %45 = vector.shape_cast %42 : vector<256x128xbf16> to vector<1x256x128xbf16>
    tpu.vector_store %arg4[%c0_32, %c0_33, %c0_34], %45 {strides = array<i32>} : memref<1x256x128xbf16, #tpu.memory_space<vmem>>, vector<1x256x128xbf16>,
    %46 = arith.extf %42 : vector<256x128xbf16> to vector<256x128xf32>
    %cst_35 = arith.constant dense<0.000000e+00> : vector<128xf32>
    %47 = vector.multi_reduction <add>, %46, %cst_35 [0] : vector<256x128xf32> to vector<128xf32>
    %48 = vector.shape_cast %47 : vector<128xf32> to vector<1x128xf32>
    %49 = arith.mulf %46, %46 : vector<256x128xf32>
    %cst_36 = arith.constant dense<0.000000e+00> : vector<128xf32>
    %50 = vector.multi_reduction <add>, %49, %cst_36 [0] : vector<256x128xf32> to vector<128xf32>
    %51 = vector.shape_cast %50 : vector<128xf32> to vector<1x128xf32>
    %52 = tpu.concatenate %48, %51 in 0 : vector<1x128xf32>, vector<1x128xf32> -> vector<2x128xf32>
    %c0_37 = arith.constant 0 : index
    %c0_38 = arith.constant 0 : index
    %c0_39 = arith.constant 0 : index
    %c0_40 = arith.constant 0 : index
    %53 = vector.load %arg5[%c0_37, %c0_38, %c0_39, %c0_40] : memref<1x1x2x128xf32, #tpu.memory_space<vmem>>, vector<1x1x2x128xf32>
    %54 = vector.shape_cast %53 : vector<1x1x2x128xf32> to vector<2x128xf32>
    %55 = vector.shape_cast %52 : vector<2x128xf32> to vector<1x1x2x128xf32>
    tpu.vector_store %arg5[%c0_37, %c0_38, %c0_39, %c0_40], %55 {strides = array<i32>} : memref<1x1x2x128xf32, #tpu.memory_space<vmem>>, vector<1x1x2x128xf32>,
    return
  }
  func.func @transform_0(%arg0: i32, %arg1: i32) -> (i32, i32, i32, i32) {
    %c0_i32 = arith.constant 0 : i32
    %c0_i32_0 = arith.constant 0 : i32
    %c0_i32_1 = arith.constant 0 : i32
    %c0_i32_2 = arith.constant 0 : i32
    return %arg0, %c0_i32, %c0_i32_0, %c0_i32_1 : i32, i32, i32, i32
  }
  func.func @transform_1(%arg0: i32, %arg1: i32) -> (i32, i32) {
    %c0_i32 = arith.constant 0 : i32
    %c0_i32_0 = arith.constant 0 : i32
    %c0_i32_1 = arith.constant 0 : i32
    return %c0_i32, %c0_i32_0 : i32, i32
  }
  func.func @transform_2(%arg0: i32, %arg1: i32) -> (i32, i32, i32) {
    %c0_i32 = arith.constant 0 : i32
    %c0_i32_0 = arith.constant 0 : i32
    return %arg0, %arg1, %c0_i32 : i32, i32, i32
  }
  func.func @transform_3(%arg0: i32, %arg1: i32) -> (i32, i32, i32, i32) {
    %c0_i32 = arith.constant 0 : i32
    %c0_i32_0 = arith.constant 0 : i32
    %c0_i32_1 = arith.constant 0 : i32
    return %arg0, %arg1, %c0_i32, %c0_i32_0 : i32, i32, i32, i32
  }
}

module attributes {stable_mosaic.version = 11 : i64} {
  func.func @_bn_prelu_kernel(%arg0: i32, %arg1: memref<512x128xbf16, #tpu.memory_space<vmem>>, %arg2: memref<1x128xf32, #tpu.memory_space<vmem>>, %arg3: memref<1x128xf32, #tpu.memory_space<vmem>>, %arg4: memref<1x128xf32, #tpu.memory_space<vmem>>, %arg5: memref<512x128xf32, #tpu.memory_space<vmem>>) attributes {dimension_semantics = [#tpu.dimension_semantics<parallel>], iteration_bounds = array<i64: 1>, scalar_prefetch = 0 : i64, scratch_operands = 0 : i64, tpu.core_type = #tpu.core_type<tc>, window_params = [{transform_indices = @transform_0, window_bounds = array<i64: 512, 128>}, {pipeline_mode = #tpu.pipeline_mode<synchronous>, transform_indices = @transform_1, window_bounds = array<i64: 1, 128>}, {pipeline_mode = #tpu.pipeline_mode<synchronous>, transform_indices = @transform_2, window_bounds = array<i64: 1, 128>}, {pipeline_mode = #tpu.pipeline_mode<synchronous>, transform_indices = @transform_3, window_bounds = array<i64: 1, 128>}, {transform_indices = @transform_4, window_bounds = array<i64: 512, 128>}]} {
    %c0 = arith.constant 0 : index
    %c0_0 = arith.constant 0 : index
    %0 = vector.load %arg1[%c0, %c0_0] : memref<512x128xbf16, #tpu.memory_space<vmem>>, vector<512x128xbf16>
    %1 = arith.extf %0 : vector<512x128xbf16> to vector<512x128xf32>
    %c0_1 = arith.constant 0 : index
    %c0_2 = arith.constant 0 : index
    %2 = vector.load %arg2[%c0_1, %c0_2] : memref<1x128xf32, #tpu.memory_space<vmem>>, vector<1x128xf32>
    %3 = vector.broadcast %2 : vector<1x128xf32> to vector<512x128xf32>
    %4 = arith.mulf %1, %3 : vector<512x128xf32>
    %c0_3 = arith.constant 0 : index
    %c0_4 = arith.constant 0 : index
    %5 = vector.load %arg3[%c0_3, %c0_4] : memref<1x128xf32, #tpu.memory_space<vmem>>, vector<1x128xf32>
    %6 = vector.broadcast %5 : vector<1x128xf32> to vector<512x128xf32>
    %7 = arith.addf %4, %6 : vector<512x128xf32>
    %cst = arith.constant 0.000000e+00 : f32
    %8 = vector.broadcast %cst : f32 to vector<512x128xf32>
    %9 = arith.cmpf ogt, %7, %8 : vector<512x128xf32>
    %c0_5 = arith.constant 0 : index
    %c0_6 = arith.constant 0 : index
    %10 = vector.load %arg4[%c0_5, %c0_6] : memref<1x128xf32, #tpu.memory_space<vmem>>, vector<1x128xf32>
    %11 = vector.broadcast %10 : vector<1x128xf32> to vector<512x128xf32>
    %12 = arith.mulf %11, %7 : vector<512x128xf32>
    %13 = arith.select %9, %7, %12 : vector<512x128xi1>, vector<512x128xf32>
    %c0_7 = arith.constant 0 : index
    %c0_8 = arith.constant 0 : index
    %14 = vector.load %arg5[%c0_7, %c0_8] : memref<512x128xf32, #tpu.memory_space<vmem>>, vector<512x128xf32>
    tpu.vector_store %arg5[%c0_7, %c0_8], %13 {strides = array<i32>} : memref<512x128xf32, #tpu.memory_space<vmem>>, vector<512x128xf32>,
    return
  }
  func.func @transform_0(%arg0: i32) -> (i32, i32) {
    %c0_i32 = arith.constant 0 : i32
    %c0_i32_0 = arith.constant 0 : i32
    return %arg0, %c0_i32 : i32, i32
  }
  func.func @transform_1(%arg0: i32) -> (i32, i32) {
    %c0_i32 = arith.constant 0 : i32
    %c0_i32_0 = arith.constant 0 : i32
    %c0_i32_1 = arith.constant 0 : i32
    return %c0_i32, %c0_i32_0 : i32, i32
  }
  func.func @transform_2(%arg0: i32) -> (i32, i32) {
    %c0_i32 = arith.constant 0 : i32
    %c0_i32_0 = arith.constant 0 : i32
    %c0_i32_1 = arith.constant 0 : i32
    return %c0_i32, %c0_i32_0 : i32, i32
  }
  func.func @transform_3(%arg0: i32) -> (i32, i32) {
    %c0_i32 = arith.constant 0 : i32
    %c0_i32_0 = arith.constant 0 : i32
    %c0_i32_1 = arith.constant 0 : i32
    return %c0_i32, %c0_i32_0 : i32, i32
  }
  func.func @transform_4(%arg0: i32) -> (i32, i32) {
    %c0_i32 = arith.constant 0 : i32
    %c0_i32_0 = arith.constant 0 : i32
    return %arg0, %c0_i32 : i32, i32
  }
}

</mosaic_0001>

<llo_original>
// kernel: conv_block_forward.3
$region0: #{conv_block_forward.3}
  #allocation0 [shape = 'u32[]', space=smem, size = 0x4, offset = 0x4, fixed_abs, tag = 'smem constant byte address 0x4 - core index']
  #allocation1 [shape = 'u32[144,128]{1,0:T(1,128)}', space=vmem, size = 0x12000, scoped, tag = 'internal scratch']
  %s0 = inlined_call_operand.vmem [shape: bf16[512,128], index: 0, kind: input, shape index: {}]
  %s1 = inlined_call_operand.vmem [shape: f32[1,128], index: 1, kind: input, shape index: {}]
  %s2 = inlined_call_operand.vmem [shape: f32[1,128], index: 2, kind: input, shape index: {}]
  %s3 = inlined_call_operand.vmem [shape: f32[1,128], index: 3, kind: input, shape index: {}]
  %s4 = inlined_call_operand.vmem [shape: f32[512,128], index: 4, kind: output, shape index: {}]
  %s5 = sld [smem:[#allocation0]]
  $region26: #{conv_block_forward.3} parent=0
    _
  %s7 = ssub.s32 1, %s5
  %s8 = scalar_select 0, %s7, %s5
  // Predicated region
  $region2: #{conv_block_forward.3} parent=0 // pred_check
    _
  $region3: #{conv_block_forward.3} parent=0 // pred_check_branch
    %10 = sbr.rel (0) target = $region5
  $region4: #{conv_block_forward.3} parent=0 // pred_region
    _
  $region5: #{conv_block_forward.3} parent=0 // pred_fallthru
    _
  // Predicated region
  $region6: #{conv_block_forward.3} parent=0 // pred_check
    _
  $region7: #{conv_block_forward.3} parent=0 // pred_check_branch
    %12 = sbr.rel (0) target = $region9
  $region8: #{conv_block_forward.3} parent=0 // pred_region
    _
  $region9: #{conv_block_forward.3} parent=0 // pred_fallthru
    _
  // Predicated region
  $region10: #{conv_block_forward.3} parent=0 // pred_check
    _
  $region11: #{conv_block_forward.3} parent=0 // pred_check_branch
    %14 = sbr.rel (0) target = $region13
  $region12: #{conv_block_forward.3} parent=0 // pred_region
    _
  $region13: #{conv_block_forward.3} parent=0 // pred_fallthru
    _
  // Predicated region
  $region14: #{conv_block_forward.3} parent=0 // pred_check
    _
  $region15: #{conv_block_forward.3} parent=0 // pred_check_branch
    %16 = sbr.rel (0) target = $region17
  $region16: #{conv_block_forward.3} parent=0 // pred_region
    _
  $region17: #{conv_block_forward.3} parent=0 // pred_fallthru
    _
  %v17 = vld [vmem:[%s0] sm:$0xf]
  %v18 = vld [vmem:[%s0 + $0x4] sm:$0xf]
  %v19 = vld [vmem:[%s0 + $0x8] sm:$0xf]
  %v20 = vld [vmem:[%s0 + $0xc] sm:$0xf]
  %v21 = vld [vmem:[%s0 + $0x10] sm:$0xf]
  %v22 = vld [vmem:[%s0 + $0x14] sm:$0xf]
  %v23 = vld [vmem:[%s0 + $0x18] sm:$0xf]
  %v24 = vld [vmem:[%s0 + $0x1c] sm:$0xf]
  %v25 = vld [vmem:[%s0 + $0x20] sm:$0xf]
  %v26 = vld [vmem:[%s0 + $0x24] sm:$0xf]
  %v27 = vld [vmem:[%s0 + $0x28] sm:$0xf]
  %v28 = vld [vmem:[%s0 + $0x2c] sm:$0xf]
  %v29 = vld [vmem:[%s0 + $0x30] sm:$0xf]
  %v30 = vld [vmem:[%s0 + $0x34] sm:$0xf]
  %v31 = vld [vmem:[%s0 + $0x38] sm:$0xf]
  %v32 = vld [vmem:[%s0 + $0x3c] sm:$0xf]
  %v33 = vld [vmem:[%s0 + $0x40] sm:$0xf]
  %v34 = vld [vmem:[%s0 + $0x44] sm:$0xf]
  %v35 = vld [vmem:[%s0 + $0x48] sm:$0xf]
  %v36 = vld [vmem:[%s0 + $0x4c] sm:$0xf]
  %v37 = vld [vmem:[%s0 + $0x50] sm:$0xf]
  %v38 = vld [vmem:[%s0 + $0x54] sm:$0xf]
  %v39 = vld [vmem:[%s0 + $0x58] sm:$0xf]
  %v40 = vld [vmem:[%s0 + $0x5c] sm:$0xf]
  %v41 = vld [vmem:[%s0 + $0x60] sm:$0xf]
  %v42 = vld [vmem:[%s0 + $0x64] sm:$0xf]
  %v43 = vld [vmem:[%s0 + $0x68] sm:$0xf]
  %v44 = vld [vmem:[%s0 + $0x6c] sm:$0xf]
  %v45 = vld [vmem:[%s0 + $0x70] sm:$0xf]
  %v46 = vld [vmem:[%s0 + $0x74] sm:$0xf]
  %v47 = vld [vmem:[%s0 + $0x78] sm:$0xf]
  %v48 = vld [vmem:[%s0 + $0x7c] sm:$0xf]
  %v49 = vld [vmem:[%s0 + $0x80] sm:$0xf]
  %v50 = vld [vmem:[%s0 + $0x84] sm:$0xf]
  %v51 = vld [vmem:[%s0 + $0x88] sm:$0xf]
  %v52 = vld [vmem:[%s0 + $0x8c] sm:$0xf]
  %v53 = vld [vmem:[%s0 + $0x90] sm:$0xf]
  %v54 = vld [vmem:[%s0 + $0x94] sm:$0xf]
  %v55 = vld [vmem:[%s0 + $0x98] sm:$0xf]
  %v56 = vld [vmem:[%s0 + $0x9c] sm:$0xf]
  %v57 = vld [vmem:[%s0 + $0xa0] sm:$0xf]
  %v58 = vld [vmem:[%s0 + $0xa4] sm:$0xf]
  %v59 = vld [vmem:[%s0 + $0xa8] sm:$0xf]
  %v60 = vld [vmem:[%s0 + $0xac] sm:$0xf]
  %v61 = vld [vmem:[%s0 + $0xb0] sm:$0xf]
  %v62 = vld [vmem:[%s0 + $0xb4] sm:$0xf]
  %v63 = vld [vmem:[%s0 + $0xb8] sm:$0xf]
  %v64 = vld [vmem:[%s0 + $0xbc] sm:$0xf]
  %v65 = vld [vmem:[%s0 + $0xc0] sm:$0xf]
  %v66 = vld [vmem:[%s0 + $0xc4] sm:$0xf]
  %v67 = vld [vmem:[%s0 + $0xc8] sm:$0xf]
  %v68 = vld [vmem:[%s0 + $0xcc] sm:$0xf]
  %v69 = vld [vmem:[%s0 + $0xd0] sm:$0xf]
  %v70 = vld [vmem:[%s0 + $0xd4] sm:$0xf]
  %v71 = vld [vmem:[%s0 + $0xd8] sm:$0xf]
  %v72 = vld [vmem:[%s0 + $0xdc] sm:$0xf]
  %v73 = vld [vmem:[%s0 + $0xe0] sm:$0xf]
  %v74 = vld [vmem:[%s0 + $0xe4] sm:$0xf]
  %v75 = vld [vmem:[%s0 + $0xe8] sm:$0xf]
  %v76 = vld [vmem:[%s0 + $0xec] sm:$0xf]
  %v77 = vld [vmem:[%s0 + $0xf0] sm:$0xf]
  %v78 = vld [vmem:[%s0 + $0xf4] sm:$0xf]
  %v79 = vld [vmem:[%s0 + $0xf8] sm:$0xf]
  %v80 = vld [vmem:[%s0 + $0xfc] sm:$0xf]
  %v81 = vunpack.c.l.bf16 %v17
  %v82 = vunpack.c.l.bf16 %v18
  %v83 = vunpack.c.l.bf16 %v19
  %v84 = vunpack.c.l.bf16 %v20
  %v85 = vunpack.c.l.bf16 %v21
  %v86 = vunpack.c.l.bf16 %v22
  %v87 = vunpack.c.l.bf16 %v23
  %v88 = vunpack.c.l.bf16 %v24
  %v89 = vunpack.c.l.bf16 %v25
  %v90 = vunpack.c.l.bf16 %v26
  %v91 = vunpack.c.l.bf16 %v27
  %v92 = vunpack.c.l.bf16 %v28
  %v93 = vunpack.c.l.bf16 %v29
  %v94 = vunpack.c.l.bf16 %v30
  %v95 = vunpack.c.l.bf16 %v31
  %v96 = vunpack.c.l.bf16 %v32
  %v97 = vunpack.c.l.bf16 %v33
  %v98 = vunpack.c.l.bf16 %v34
  %v99 = vunpack.c.l.bf16 %v35
  %v100 = vunpack.c.l.bf16 %v36
  %v101 = vunpack.c.l.bf16 %v37
  %v102 = vunpack.c.l.bf16 %v38
  %v103 = vunpack.c.l.bf16 %v39
  %v104 = vunpack.c.l.bf16 %v40
  %v105 = vunpack.c.l.bf16 %v41
  %v106 = vunpack.c.l.bf16 %v42
  %v107 = vunpack.c.l.bf16 %v43
  %v108 = vunpack.c.l.bf16 %v44
  %v109 = vunpack.c.l.bf16 %v45
  %v110 = vunpack.c.l.bf16 %v46
  %v111 = vunpack.c.l.bf16 %v47
  %v112 = vunpack.c.l.bf16 %v48
  %v113 = vunpack.c.l.bf16 %v49
  %v114 = vunpack.c.l.bf16 %v50
  %v115 = vunpack.c.l.bf16 %v51
  %v116 = vunpack.c.l.bf16 %v52
  %v117 = vunpack.c.l.bf16 %v53
  %v118 = vunpack.c.l.bf16 %v54
  %v119 = vunpack.c.l.bf16 %v55
  %v120 = vunpack.c.l.bf16 %v56
  %v121 = vunpack.c.l.bf16 %v57
  %v122 = vunpack.c.l.bf16 %v58
  %v123 = vunpack.c.l.bf16 %v59
  %v124 = vunpack.c.l.bf16 %v60
  %v125 = vunpack.c.l.bf16 %v61
  %v126 = vunpack.c.l.bf16 %v62
  %v127 = vunpack.c.l.bf16 %v63
  %v128 = vunpack.c.l.bf16 %v64
  %v129 = vunpack.c.l.bf16 %v65
  %v130 = vunpack.c.l.bf16 %v66
  %v131 = vunpack.c.l.bf16 %v67
  %v132 = vunpack.c.l.bf16 %v68
  %v133 = vunpack.c.l.bf16 %v69
  %v134 = vunpack.c.l.bf16 %v70
  %v135 = vunpack.c.l.bf16 %v71
  %v136 = vunpack.c.l.bf16 %v72
  %v137 = vunpack.c.l.bf16 %v73
  %v138 = vunpack.c.l.bf16 %v74
  %v139 = vunpack.c.l.bf16 %v75
  %v140 = vunpack.c.l.bf16 %v76
  %v141 = vunpack.c.l.bf16 %v77
  %v142 = vunpack.c.l.bf16 %v78
  %v143 = vunpack.c.l.bf16 %v79
  %v144 = vunpack.c.l.bf16 %v80
  %v145 = vld [vmem:[%s1] sm:$0x1]
  %v147 = vlaneseq
  %v148 = vshrl.u32 %v147, 7
  %v149 = vsub.s32 0, %v148
  %v150 = vrot.slane %v145, %v149
  %v152 = vmul.f32 %v81, %v150
  %v153 = vmul.f32 %v82, %v150
  %v154 = vmul.f32 %v83, %v150
  %v155 = vmul.f32 %v84, %v150
  %v156 = vmul.f32 %v85, %v150
  %v157 = vmul.f32 %v86, %v150
  %v158 = vmul.f32 %v87, %v150
  %v159 = vmul.f32 %v88, %v150
  %v160 = vmul.f32 %v89, %v150
  %v161 = vmul.f32 %v90, %v150
  %v162 = vmul.f32 %v91, %v150
  %v163 = vmul.f32 %v92, %v150
  %v164 = vmul.f32 %v93, %v150
  %v165 = vmul.f32 %v94, %v150
  %v166 = vmul.f32 %v95, %v150
  %v167 = vmul.f32 %v96, %v150
  %v168 = vmul.f32 %v97, %v150
  %v169 = vmul.f32 %v98, %v150
  %v170 = vmul.f32 %v99, %v150
  %v171 = vmul.f32 %v100, %v150
  %v172 = vmul.f32 %v101, %v150
  %v173 = vmul.f32 %v102, %v150
  %v174 = vmul.f32 %v103, %v150
  %v175 = vmul.f32 %v104, %v150
  %v176 = vmul.f32 %v105, %v150
  %v177 = vmul.f32 %v106, %v150
  %v178 = vmul.f32 %v107, %v150
  %v179 = vmul.f32 %v108, %v150
  %v180 = vmul.f32 %v109, %v150
  %v181 = vmul.f32 %v110, %v150
  %v182 = vmul.f32 %v111, %v150
  %v183 = vmul.f32 %v112, %v150
  %v184 = vmul.f32 %v113, %v150
  %v185 = vmul.f32 %v114, %v150
  %v186 = vmul.f32 %v115, %v150
  %v187 = vmul.f32 %v116, %v150
  %v188 = vmul.f32 %v117, %v150
  %v189 = vmul.f32 %v118, %v150
  %v190 = vmul.f32 %v119, %v150
  %v191 = vmul.f32 %v120, %v150
  %v192 = vmul.f32 %v121, %v150
  %v193 = vmul.f32 %v122, %v150
  %v194 = vmul.f32 %v123, %v150
  %v195 = vmul.f32 %v124, %v150
  %v196 = vmul.f32 %v125, %v150
  %v197 = vmul.f32 %v126, %v150
  %v198 = vmul.f32 %v127, %v150
  %v199 = vmul.f32 %v128, %v150
  %v200 = vmul.f32 %v129, %v150
  %v201 = vmul.f32 %v130, %v150
  %v202 = vmul.f32 %v131, %v150
  %v203 = vmul.f32 %v132, %v150
  %v204 = vmul.f32 %v133, %v150
  %v205 = vmul.f32 %v134, %v150
  %v206 = vmul.f32 %v135, %v150
  %v207 = vmul.f32 %v136, %v150
  %v208 = vmul.f32 %v137, %v150
  %v209 = vmul.f32 %v138, %v150
  %v210 = vmul.f32 %v139, %v150
  %v211 = vmul.f32 %v140, %v150
  %v212 = vmul.f32 %v141, %v150
  %v213 = vmul.f32 %v142, %v150
  %v214 = vmul.f32 %v143, %v150
  %v215 = vmul.f32 %v144, %v150
  %v216 = vld [vmem:[%s2] sm:$0x1]
  %v218 = vlaneseq
  %v219 = vshrl.u32 %v218, 7
  %v220 = vsub.s32 0, %v219
  %v221 = vrot.slane %v216, %v220
  %v223 = vadd.f32 %v152, %v221
  %v224 = vadd.f32 %v153, %v221
  %v225 = vadd.f32 %v154, %v221
  %v226 = vadd.f32 %v155, %v221
  %v227 = vadd.f32 %v156, %v221
  %v228 = vadd.f32 %v157, %v221
  %v229 = vadd.f32 %v158, %v221
  %v230 = vadd.f32 %v159, %v221
  %v231 = vadd.f32 %v160, %v221
  %v232 = vadd.f32 %v161, %v221
  %v233 = vadd.f32 %v162, %v221
  %v234 = vadd.f32 %v163, %v221
  %v235 = vadd.f32 %v164, %v221
  %v236 = vadd.f32 %v165, %v221
  %v237 = vadd.f32 %v166, %v221
  %v238 = vadd.f32 %v167, %v221
  %v239 = vadd.f32 %v168, %v221
  %v240 = vadd.f32 %v169, %v221
  %v241 = vadd.f32 %v170, %v221
  %v242 = vadd.f32 %v171, %v221
  %v243 = vadd.f32 %v172, %v221
  %v244 = vadd.f32 %v173, %v221
  %v245 = vadd.f32 %v174, %v221
  %v246 = vadd.f32 %v175, %v221
  %v247 = vadd.f32 %v176, %v221
  %v248 = vadd.f32 %v177, %v221
  %v249 = vadd.f32 %v178, %v221
  %v250 = vadd.f32 %v179, %v221
  %v251 = vadd.f32 %v180, %v221
  %v252 = vadd.f32 %v181, %v221
  %v253 = vadd.f32 %v182, %v221
  %v254 = vadd.f32 %v183, %v221
  %v255 = vadd.f32 %v184, %v221
  %v256 = vadd.f32 %v185, %v221
  %v257 = vadd.f32 %v186, %v221
  %v258 = vadd.f32 %v187, %v221
  %v259 = vadd.f32 %v188, %v221
  %v260 = vadd.f32 %v189, %v221
  %v261 = vadd.f32 %v190, %v221
  %v262 = vadd.f32 %v191, %v221
  %v263 = vadd.f32 %v192, %v221
  %v264 = vadd.f32 %v193, %v221
  %v265 = vadd.f32 %v194, %v221
  %v266 = vadd.f32 %v195, %v221
  %v267 = vadd.f32 %v196, %v221
  %v268 = vadd.f32 %v197, %v221
  %v269 = vadd.f32 %v198, %v221
  %v270 = vadd.f32 %v199, %v221
  %v271 = vadd.f32 %v200, %v221
  %v272 = vadd.f32 %v201, %v221
  %v273 = vadd.f32 %v202, %v221
  %v274 = vadd.f32 %v203, %v221
  %v275 = vadd.f32 %v204, %v221
  %v276 = vadd.f32 %v205, %v221
  %v277 = vadd.f32 %v206, %v221
  %v278 = vadd.f32 %v207, %v221
  %v279 = vadd.f32 %v208, %v221
  %v280 = vadd.f32 %v209, %v221
  %v281 = vadd.f32 %v210, %v221
  %v282 = vadd.f32 %v211, %v221
  %v283 = vadd.f32 %v212, %v221
  %v284 = vadd.f32 %v213, %v221
  %v285 = vadd.f32 %v214, %v221
  %v286 = vadd.f32 %v215, %v221
  %vm287 = vcmp.gt.f32.partialorder %v223, 0.0
  %vm288 = vcmp.gt.f32.partialorder %v224, 0.0
  %vm289 = vcmp.gt.f32.partialorder %v225, 0.0
  %vm290 = vcmp.gt.f32.partialorder %v226, 0.0
  %vm291 = vcmp.gt.f32.partialorder %v227, 0.0
  %vm292 = vcmp.gt.f32.partialorder %v228, 0.0
  %vm293 = vcmp.gt.f32.partialorder %v229, 0.0
  %vm294 = vcmp.gt.f32.partialorder %v230, 0.0
  %vm295 = vcmp.gt.f32.partialorder %v231, 0.0
  %vm296 = vcmp.gt.f32.partialorder %v232, 0.0
  %vm297 = vcmp.gt.f32.partialorder %v233, 0.0
  %vm298 = vcmp.gt.f32.partialorder %v234, 0.0
  %vm299 = vcmp.gt.f32.partialorder %v235, 0.0
  %vm300 = vcmp.gt.f32.partialorder %v236, 0.0
  %vm301 = vcmp.gt.f32.partialorder %v237, 0.0
  %vm302 = vcmp.gt.f32.partialorder %v238, 0.0
  %vm303 = vcmp.gt.f32.partialorder %v239, 0.0
  %vm304 = vcmp.gt.f32.partialorder %v240, 0.0
  %vm305 = vcmp.gt.f32.partialorder %v241, 0.0
  %vm306 = vcmp.gt.f32.partialorder %v242, 0.0
  %vm307 = vcmp.gt.f32.partialorder %v243, 0.0
  %vm308 = vcmp.gt.f32.partialorder %v244, 0.0
  %vm309 = vcmp.gt.f32.partialorder %v245, 0.0
  %vm310 = vcmp.gt.f32.partialorder %v246, 0.0
  %vm311 = vcmp.gt.f32.partialorder %v247, 0.0
  %vm312 = vcmp.gt.f32.partialorder %v248, 0.0
  %vm313 = vcmp.gt.f32.partialorder %v249, 0.0
  %vm314 = vcmp.gt.f32.partialorder %v250, 0.0
  %vm315 = vcmp.gt.f32.partialorder %v251, 0.0
  %vm316 = vcmp.gt.f32.partialorder %v252, 0.0
  %vm317 = vcmp.gt.f32.partialorder %v253, 0.0
  %vm318 = vcmp.gt.f32.partialorder %v254, 0.0
  %vm319 = vcmp.gt.f32.partialorder %v255, 0.0
  %vm320 = vcmp.gt.f32.partialorder %v256, 0.0
  %vm321 = vcmp.gt.f32.partialorder %v257, 0.0
  %vm322 = vcmp.gt.f32.partialorder %v258, 0.0
  %vm323 = vcmp.gt.f32.partialorder %v259, 0.0
  %vm324 = vcmp.gt.f32.partialorder %v260, 0.0
  %vm325 = vcmp.gt.f32.partialorder %v261, 0.0
  %vm326 = vcmp.gt.f32.partialorder %v262, 0.0
  %vm327 = vcmp.gt.f32.partialorder %v263, 0.0
  %vm328 = vcmp.gt.f32.partialorder %v264, 0.0
  %vm329 = vcmp.gt.f32.partialorder %v265, 0.0
  %vm330 = vcmp.gt.f32.partialorder %v266, 0.0
  %vm331 = vcmp.gt.f32.partialorder %v267, 0.0
  %vm332 = vcmp.gt.f32.partialorder %v268, 0.0
  %vm333 = vcmp.gt.f32.partialorder %v269, 0.0
  %vm334 = vcmp.gt.f32.partialorder %v270, 0.0
  %vm335 = vcmp.gt.f32.partialorder %v271, 0.0
  %vm336 = vcmp.gt.f32.partialorder %v272, 0.0
  %vm337 = vcmp.gt.f32.partialorder %v273, 0.0
  %vm338 = vcmp.gt.f32.partialorder %v274, 0.0
  %vm339 = vcmp.gt.f32.partialorder %v275, 0.0
  %vm340 = vcmp.gt.f32.partialorder %v276, 0.0
  %vm341 = vcmp.gt.f32.partialorder %v277, 0.0
  %vm342 = vcmp.gt.f32.partialorder %v278, 0.0
  %vm343 = vcmp.gt.f32.partialorder %v279, 0.0
  %vm344 = vcmp.gt.f32.partialorder %v280, 0.0
  %vm345 = vcmp.gt.f32.partialorder %v281, 0.0
  %vm346 = vcmp.gt.f32.partialorder %v282, 0.0
  %vm347 = vcmp.gt.f32.partialorder %v283, 0.0
  %vm348 = vcmp.gt.f32.partialorder %v284, 0.0
  %vm349 = vcmp.gt.f32.partialorder %v285, 0.0
  %vm350 = vcmp.gt.f32.partialorder %v286, 0.0
  %v351 = vld [vmem:[%s3] sm:$0x1]
  %v353 = vlaneseq
  %v354 = vshrl.u32 %v353, 7
  %v355 = vsub.s32 0, %v354
  %v356 = vrot.slane %v351, %v355
  %v358 = vmul.f32 %v356, %v223
  %v359 = vmul.f32 %v356, %v224
  %v360 = vmul.f32 %v356, %v225
  %v361 = vmul.f32 %v356, %v226
  %v362 = vmul.f32 %v356, %v227
  %v363 = vmul.f32 %v356, %v228
  %v364 = vmul.f32 %v356, %v229
  %v365 = vmul.f32 %v356, %v230
  %v366 = vmul.f32 %v356, %v231
  %v367 = vmul.f32 %v356, %v232
  %v368 = vmul.f32 %v356, %v233
  %v369 = vmul.f32 %v356, %v234
  %v370 = vmul.f32 %v356, %v235
  %v371 = vmul.f32 %v356, %v236
  %v372 = vmul.f32 %v356, %v237
  %v373 = vmul.f32 %v356, %v238
  %v374 = vmul.f32 %v356, %v239
  %v375 = vmul.f32 %v356, %v240
  %v376 = vmul.f32 %v356, %v241
  %v377 = vmul.f32 %v356, %v242
  %v378 = vmul.f32 %v356, %v243
  %v379 = vmul.f32 %v356, %v244
  %v380 = vmul.f32 %v356, %v245
  %v381 = vmul.f32 %v356, %v246
  %v382 = vmul.f32 %v356, %v247
  %v383 = vmul.f32 %v356, %v248
  %v384 = vmul.f32 %v356, %v249
  %v385 = vmul.f32 %v356, %v250
  %v386 = vmul.f32 %v356, %v251
  %v387 = vmul.f32 %v356, %v252
  %v388 = vmul.f32 %v356, %v253
  %v389 = vmul.f32 %v356, %v254
  %v390 = vmul.f32 %v356, %v255
  %v391 = vmul.f32 %v356, %v256
  %v392 = vmul.f32 %v356, %v257
  %v393 = vmul.f32 %v356, %v258
  %v394 = vmul.f32 %v356, %v259
  %v395 = vmul.f32 %v356, %v260
  %v396 = vmul.f32 %v356, %v261
  %v397 = vmul.f32 %v356, %v262
  %v398 = vmul.f32 %v356, %v263
  %v399 = vmul.f32 %v356, %v264
  %v400 = vmul.f32 %v356, %v265
  %v401 = vmul.f32 %v356, %v266
  %v402 = vmul.f32 %v356, %v267
  %v403 = vmul.f32 %v356, %v268
  %v404 = vmul.f32 %v356, %v269
  %v405 = vmul.f32 %v356, %v270
  %v406 = vmul.f32 %v356, %v271
  %v407 = vmul.f32 %v356, %v272
  %v408 = vmul.f32 %v356, %v273
  %v409 = vmul.f32 %v356, %v274
  %v410 = vmul.f32 %v356, %v275
  %v411 = vmul.f32 %v356, %v276
  %v412 = vmul.f32 %v356, %v277
  %v413 = vmul.f32 %v356, %v278
  %v414 = vmul.f32 %v356, %v279
  %v415 = vmul.f32 %v356, %v280
  %v416 = vmul.f32 %v356, %v281
  %v417 = vmul.f32 %v356, %v282
  %v418 = vmul.f32 %v356, %v283
  %v419 = vmul.f32 %v356, %v284
  %v420 = vmul.f32 %v356, %v285
  %v421 = vmul.f32 %v356, %v286
  %v422 = vsel %vm287, %v223, %v358
  %v423 = vsel %vm288, %v224, %v359
  %v424 = vsel %vm289, %v225, %v360
  %v425 = vsel %vm290, %v226, %v361
  %v426 = vsel %vm291, %v227, %v362
  %v427 = vsel %vm292, %v228, %v363
  %v428 = vsel %vm293, %v229, %v364
  %v429 = vsel %vm294, %v230, %v365
  %v430 = vsel %vm295, %v231, %v366
  %v431 = vsel %vm296, %v232, %v367
  %v432 = vsel %vm297, %v233, %v368
  %v433 = vsel %vm298, %v234, %v369
  %v434 = vsel %vm299, %v235, %v370
  %v435 = vsel %vm300, %v236, %v371
  %v436 = vsel %vm301, %v237, %v372
  %v437 = vsel %vm302, %v238, %v373
  %v438 = vsel %vm303, %v239, %v374
  %v439 = vsel %vm304, %v240, %v375
  %v440 = vsel %vm305, %v241, %v376
  %v441 = vsel %vm306, %v242, %v377
  %v442 = vsel %vm307, %v243, %v378
  %v443 = vsel %vm308, %v244, %v379
  %v444 = vsel %vm309, %v245, %v380
  %v445 = vsel %vm310, %v246, %v381
  %v446 = vsel %vm311, %v247, %v382
  %v447 = vsel %vm312, %v248, %v383
  %v448 = vsel %vm313, %v249, %v384
  %v449 = vsel %vm314, %v250, %v385
  %v450 = vsel %vm315, %v251, %v386
  %v451 = vsel %vm316, %v252, %v387
  %v452 = vsel %vm317, %v253, %v388
  %v453 = vsel %vm318, %v254, %v389
  %v454 = vsel %vm319, %v255, %v390
  %v455 = vsel %vm320, %v256, %v391
  %v456 = vsel %vm321, %v257, %v392
  %v457 = vsel %vm322, %v258, %v393
  %v458 = vsel %vm323, %v259, %v394
  %v459 = vsel %vm324, %v260, %v395
  %v460 = vsel %vm325, %v261, %v396
  %v461 = vsel %vm326, %v262, %v397
  %v462 = vsel %vm327, %v263, %v398
  %v463 = vsel %vm328, %v264, %v399
  %v464 = vsel %vm329, %v265, %v400
  %v465 = vsel %vm330, %v266, %v401
  %v466 = vsel %vm331, %v267, %v402
  %v467 = vsel %vm332, %v268, %v403
  %v468 = vsel %vm333, %v269, %v404
  %v469 = vsel %vm334, %v270, %v405
  %v470 = vsel %vm335, %v271, %v406
  %v471 = vsel %vm336, %v272, %v407
  %v472 = vsel %vm337, %v273, %v408
  %v473 = vsel %vm338, %v274, %v409
  %v474 = vsel %vm339, %v275, %v410
  %v475 = vsel %vm340, %v276, %v411
  %v476 = vsel %vm341, %v277, %v412
  %v477 = vsel %vm342, %v278, %v413
  %v478 = vsel %vm343, %v279, %v414
  %v479 = vsel %vm344, %v280, %v415
  %v480 = vsel %vm345, %v281, %v416
  %v481 = vsel %vm346, %v282, %v417
  %v482 = vsel %vm347, %v283, %v418
  %v483 = vsel %vm348, %v284, %v419
  %v484 = vsel %vm349, %v285, %v420
  %v485 = vsel %vm350, %v286, %v421
  %486 = vst [vmem:[%s4] sm:$0xff] %v422
  %487 = vst [vmem:[%s4 + $0x8] sm:$0xff] %v423
  %488 = vst [vmem:[%s4 + $0x10] sm:$0xff] %v424
  %489 = vst [vmem:[%s4 + $0x18] sm:$0xff] %v425
  %490 = vst [vmem:[%s4 + $0x20] sm:$0xff] %v426
  %491 = vst [vmem:[%s4 + $0x28] sm:$0xff] %v427
  %492 = vst [vmem:[%s4 + $0x30] sm:$0xff] %v428
  %493 = vst [vmem:[%s4 + $0x38] sm:$0xff] %v429
  %494 = vst [vmem:[%s4 + $0x40] sm:$0xff] %v430
  %495 = vst [vmem:[%s4 + $0x48] sm:$0xff] %v431
  %496 = vst [vmem:[%s4 + $0x50] sm:$0xff] %v432
  %497 = vst [vmem:[%s4 + $0x58] sm:$0xff] %v433
  %498 = vst [vmem:[%s4 + $0x60] sm:$0xff] %v434
  %499 = vst [vmem:[%s4 + $0x68] sm:$0xff] %v435
  %500 = vst [vmem:[%s4 + $0x70] sm:$0xff] %v436
  %501 = vst [vmem:[%s4 + $0x78] sm:$0xff] %v437
  %502 = vst [vmem:[%s4 + $0x80] sm:$0xff] %v438
  %503 = vst [vmem:[%s4 + $0x88] sm:$0xff] %v439
  %504 = vst [vmem:[%s4 + $0x90] sm:$0xff] %v440
  %505 = vst [vmem:[%s4 + $0x98] sm:$0xff] %v441
  %506 = vst [vmem:[%s4 + $0xa0] sm:$0xff] %v442
  %507 = vst [vmem:[%s4 + $0xa8] sm:$0xff] %v443
  %508 = vst [vmem:[%s4 + $0xb0] sm:$0xff] %v444
  %509 = vst [vmem:[%s4 + $0xb8] sm:$0xff] %v445
  %510 = vst [vmem:[%s4 + $0xc0] sm:$0xff] %v446
  %511 = vst [vmem:[%s4 + $0xc8] sm:$0xff] %v447
  %512 = vst [vmem:[%s4 + $0xd0] sm:$0xff] %v448
  %513 = vst [vmem:[%s4 + $0xd8] sm:$0xff] %v449
  %514 = vst [vmem:[%s4 + $0xe0] sm:$0xff] %v450
  %515 = vst [vmem:[%s4 + $0xe8] sm:$0xff] %v451
  %516 = vst [vmem:[%s4 + $0xf0] sm:$0xff] %v452
  %517 = vst [vmem:[%s4 + $0xf8] sm:$0xff] %v453
  %518 = vst [vmem:[%s4 + $0x100] sm:$0xff] %v454
  %519 = vst [vmem:[%s4 + $0x108] sm:$0xff] %v455
  %520 = vst [vmem:[%s4 + $0x110] sm:$0xff] %v456
  %521 = vst [vmem:[%s4 + $0x118] sm:$0xff] %v457
  %522 = vst [vmem:[%s4 + $0x120] sm:$0xff] %v458
  %523 = vst [vmem:[%s4 + $0x128] sm:$0xff] %v459
  %524 = vst [vmem:[%s4 + $0x130] sm:$0xff] %v460
  %525 = vst [vmem:[%s4 + $0x138] sm:$0xff] %v461
  %526 = vst [vmem:[%s4 + $0x140] sm:$0xff] %v462
  %527 = vst [vmem:[%s4 + $0x148] sm:$0xff] %v463
  %528 = vst [vmem:[%s4 + $0x150] sm:$0xff] %v464
  %529 = vst [vmem:[%s4 + $0x158] sm:$0xff] %v465
  %530 = vst [vmem:[%s4 + $0x160] sm:$0xff] %v466
  %531 = vst [vmem:[%s4 + $0x168] sm:$0xff] %v467
  %532 = vst [vmem:[%s4 + $0x170] sm:$0xff] %v468
  %533 = vst [vmem:[%s4 + $0x178] sm:$0xff] %v469
  %534 = vst [vmem:[%s4 + $0x180] sm:$0xff] %v470
  %535 = vst [vmem:[%s4 + $0x188] sm:$0xff] %v471
  %536 = vst [vmem:[%s4 + $0x190] sm:$0xff] %v472
  %537 = vst [vmem:[%s4 + $0x198] sm:$0xff] %v473
  %538 = vst [vmem:[%s4 + $0x1a0] sm:$0xff] %v474
  %539 = vst [vmem:[%s4 + $0x1a8] sm:$0xff] %v475
  %540 = vst [vmem:[%s4 + $0x1b0] sm:$0xff] %v476
  %541 = vst [vmem:[%s4 + $0x1b8] sm:$0xff] %v477
  %542 = vst [vmem:[%s4 + $0x1c0] sm:$0xff] %v478
  %543 = vst [vmem:[%s4 + $0x1c8] sm:$0xff] %v479
  %544 = vst [vmem:[%s4 + $0x1d0] sm:$0xff] %v480
  %545 = vst [vmem:[%s4 + $0x1d8] sm:$0xff] %v481
  %546 = vst [vmem:[%s4 + $0x1e0] sm:$0xff] %v482
  %547 = vst [vmem:[%s4 + $0x1e8] sm:$0xff] %v483
  %548 = vst [vmem:[%s4 + $0x1f0] sm:$0xff] %v484
  %549 = vst [vmem:[%s4 + $0x1f8] sm:$0xff] %v485
  // Predicated region
  $region18: #{conv_block_forward.3} parent=0 // pred_check
    _
  $region19: #{conv_block_forward.3} parent=0 // pred_check_branch
    %551 = sbr.rel (0) target = $region21
  $region20: #{conv_block_forward.3} parent=0 // pred_region
    _
  $region21: #{conv_block_forward.3} parent=0 // pred_fallthru
    _
  // Predicated region
  $region22: #{conv_block_forward.3} parent=0 // pred_check
    _
  $region23: #{conv_block_forward.3} parent=0 // pred_check_branch
    %553 = sbr.rel (0) target = $region25
  $region24: #{conv_block_forward.3} parent=0 // pred_region
    _
  $region25: #{conv_block_forward.3} parent=0 // pred_fallthru
    _

// kernel: conv_block_forward.2
$region0: #{conv_block_forward.2}
  #allocation0 [shape = 'u32[]', space=smem, size = 0x4, offset = 0x4, fixed_abs, tag = 'smem constant byte address 0x4 - core index']
  #allocation1 [shape = 'u32[144,128]{1,0:T(1,128)}', space=vmem, size = 0x12000, scoped, tag = 'internal scratch']
  %s0 = inlined_call_operand.vmem [shape: bf16[2,18,18,4], index: 0, kind: input, shape index: {}]
  %s1 = inlined_call_operand.vmem [shape: bf16[36,128], index: 1, kind: input, shape index: {}]
  %s2 = inlined_call_operand.vmem [shape: bf16[2,256,128], index: 2, kind: output, shape index: {0}]
  %s3 = inlined_call_operand.vmem [shape: f32[2,1,2,128], index: 3, kind: output, shape index: {1}]
  %4 = xla_tuple %s2, %s3
  %s5 = sld [smem:[#allocation0]]
  $region49: #{conv_block_forward.2} parent=0
    _
  %s7 = ssub.s32 1, %s5
  %s8 = scalar_select 0, %s7, %s5
  loop: start=0, step=1, limit=4
  $region2: #{conv_block_forward.2} parent=0 // loop_pre_header
    _
  $region3: #{conv_block_forward.2} parent=0 // loop_header
    %s10 = sphi 0, %s14
    %p11 = scmp.ge.s32.totalorder %s10, 4
    %s17 = sphi 0, %s29
    %s18 = sphi 0, %s25
    %s19 = sphi 0, %s17
    %s20 = sphi 0, %s18
    %s21 = sphi 0, %s19
    %s22 = sphi 0, %s20
    %s32 = sphi 0, %s34
    %s35 = sphi 0, %s32
    %s36 = sphi 0, %s35
    %s52 = sphi 0, %s36
    %s56 = sphi 0, %s56
    %s58 = sphi 0, %s56
    %s59 = sphi 0, %s58
    %s73 = sphi 0, %s59
    %s81 = sphi 0, %s83
    %s84 = sphi 0, %s81
    %s85 = sphi 0, %s84
    %s101 = sphi 0, %s85
    %s109 = sphi 0, %s111
    %s112 = sphi 0, %s109
    %s113 = sphi 0, %s112
    %s129 = sphi 0, %s113
  $region4: #{conv_block_forward.2} parent=0 // loop_header_branch
    %13 = sbr.rel (%p11) target = $region8
  $region5: #{conv_block_forward.2} parent=0 // loop_body
    %s15 = ssub.s32 %s10, 1
    %s16 = ssub.s32 %s10, 2
    %s23 = sadd.s32 1, %s18
    %p24 = scmp.ge.s32.totalorder %s23, 1
    %s25 = scalar_select %p24, 0, %s23
    %s26 = sadd.s32 1, %s17
    %s27 = scalar_select %p24, %s26, %s17
    %p28 = scmp.ge.s32.totalorder %s27, 2
    %s29 = scalar_select %p28, 0, %s27
    %s30 = ssub.s32 %s17, %s29
    %p31 = scmp.eq.s32.totalorder %s30, 0
    %s33 = sadd.s32 %s32, 1
    %s34 = scalar_select %p31, %s32, %s33
    %p37 = pneg %p31
    %p38 = scmp.eq.s32.totalorder %s10, 1
    %p39 = por %p37, %p38
    %p40 = scmp.ne.s32.totalorder %s32, %s35
    %p41 = scmp.eq.s32.totalorder %s10, 0
    %p42 = por %p40, %p41
    %p43 = scmp.ne.s32.totalorder %s32, %s35
    %p44 = scmp.eq.s32.totalorder %s15, 1
    %p45 = por %p43, %p44
    %p46 = scmp.ne.s32.totalorder %s35, %s36
    %p47 = scmp.eq.s32.totalorder %s15, 0
    %p48 = por %p46, %p47
    %p49 = scmp.ne.s32.totalorder %s35, %s36
    %p50 = scmp.eq.s32.totalorder %s16, 1
    %p51 = por %p49, %p50
    %p53 = scmp.ne.s32.totalorder %s36, %s52
    %p54 = scmp.eq.s32.totalorder %s16, 0
    %p55 = por %p53, %p54
    %s57 = sadd.s32 %s56, 1
    %p60 = scmp.eq.s32.totalorder %s10, 1
    %p61 = scmp.ne.s32.totalorder %s56, %s58
    %p62 = scmp.eq.s32.totalorder %s10, 0
    %p63 = por %p61, %p62
    %p64 = scmp.ne.s32.totalorder %s56, %s58
    %p65 = scmp.eq.s32.totalorder %s15, 1
    %p66 = por %p64, %p65
    %p67 = scmp.ne.s32.totalorder %s58, %s59
    %p68 = scmp.eq.s32.totalorder %s15, 0
    %p69 = por %p67, %p68
    %p70 = scmp.ne.s32.totalorder %s58, %s59
    %p71 = scmp.eq.s32.totalorder %s16, 1
    %p72 = por %p70, %p71
    %p74 = scmp.ne.s32.totalorder %s59, %s73
    %p75 = scmp.eq.s32.totalorder %s16, 0
    %p76 = por %p74, %p75
    %s77 = ssub.s32 %s17, %s29
    %s78 = ssub.s32 %s18, %s25
    %s79 = sor.u32 %s77, %s78
    %p80 = scmp.eq.s32.totalorder %s79, 0
    %s82 = sadd.s32 %s81, 1
    %s83 = scalar_select %p80, %s81, %s82
    %p86 = pneg %p80
    %p87 = scmp.eq.s32.totalorder %s10, 1
    %p88 = por %p86, %p87
    %p89 = scmp.ne.s32.totalorder %s81, %s84
    %p90 = scmp.eq.s32.totalorder %s10, 0
    %p91 = por %p89, %p90
    %p92 = scmp.ne.s32.totalorder %s81, %s84
    %p93 = scmp.eq.s32.totalorder %s15, 1
    %p94 = por %p92, %p93
    %p95 = scmp.ne.s32.totalorder %s84, %s85
    %p96 = scmp.eq.s32.totalorder %s15, 0
    %p97 = por %p95, %p96
    %p98 = scmp.ne.s32.totalorder %s84, %s85
    %p99 = scmp.eq.s32.totalorder %s16, 1
    %p100 = por %p98, %p99
    %p102 = scmp.ne.s32.totalorder %s85, %s101
    %p103 = scmp.eq.s32.totalorder %s16, 0
    %p104 = por %p102, %p103
    %s105 = ssub.s32 %s17, %s29
    %s106 = ssub.s32 %s18, %s25
    %s107 = sor.u32 %s105, %s106
    %p108 = scmp.eq.s32.totalorder %s107, 0
    %s110 = sadd.s32 %s109, 1
    %s111 = scalar_select %p108, %s109, %s110
    %p114 = pneg %p108
    %p115 = scmp.eq.s32.totalorder %s10, 1
    %p116 = por %p114, %p115
    %p117 = scmp.ne.s32.totalorder %s109, %s112
    %p118 = scmp.eq.s32.totalorder %s10, 0
    %p119 = por %p117, %p118
    %p120 = scmp.ne.s32.totalorder %s109, %s112
    %p121 = scmp.eq.s32.totalorder %s15, 1
    %p122 = por %p120, %p121
    %p123 = scmp.ne.s32.totalorder %s112, %s113
    %p124 = scmp.eq.s32.totalorder %s15, 0
    %p125 = por %p123, %p124
    %p126 = scmp.ne.s32.totalorder %s112, %s113
    %p127 = scmp.eq.s32.totalorder %s16, 1
    %p128 = por %p126, %p127
    %p130 = scmp.ne.s32.totalorder %s113, %s129
    %p131 = scmp.eq.s32.totalorder %s16, 0
    %p132 = por %p130, %p131
    %p133 = scmp.le.s32.totalorder 1, %s10
    %p134 = scmp.lt.s32.totalorder %s10, 3
    %p135 = pnand %p133, %p134
    %p136 = pneg %p135
    // Predicated region
    $region9: #{conv_block_forward.2} parent=5 // pred_check
      _
    $region10: #{conv_block_forward.2} parent=5 // pred_check_branch
      %138 = sbr.rel (%p135) target = $region12
    $region11: #{conv_block_forward.2} parent=5 // pred_region
      %s139 = ssub.s32 %s10, 1
      // Predicated region
      $region13: #{conv_block_forward.2} parent=11 // pred_check
        %p140 = pneg %p69
      $region14: #{conv_block_forward.2} parent=11 // pred_check_branch
        %142 = sbr.rel (%p140) target = $region16
      $region15: #{conv_block_forward.2} parent=11 // pred_region
        _
      $region16: #{conv_block_forward.2} parent=11 // pred_fallthru
        _
    $region12: #{conv_block_forward.2} parent=5 // pred_fallthru
      _
    %p143 = scmp.lt.s32.totalorder %s10, 2
    // Predicated region
    $region17: #{conv_block_forward.2} parent=5 // pred_check
      %p144 = pneg %p143
    $region18: #{conv_block_forward.2} parent=5 // pred_check_branch
      %146 = sbr.rel (%p144) target = $region20
    $region19: #{conv_block_forward.2} parent=5 // pred_region
      // Predicated region
      $region21: #{conv_block_forward.2} parent=19 // pred_check
        %p147 = pneg %p42
      $region22: #{conv_block_forward.2} parent=19 // pred_check_branch
        %149 = sbr.rel (%p147) target = $region24
      $region23: #{conv_block_forward.2} parent=19 // pred_region
        %p150 = scmp.lt.s32.totalorder %s17, 1
        %s151 = scalar_select %p150, %s17, 1
        %s152 = smul.addr %s151, 54
        %s153 = smul.addr %s152, 4
        %s154 = scalar_lea.vmem %s0, %s153
      $region24: #{conv_block_forward.2} parent=19 // pred_fallthru
        _
    $region20: #{conv_block_forward.2} parent=5 // pred_fallthru
      _
    %p155 = scmp.le.s32.totalorder 1, %s10
    %p156 = scmp.lt.s32.totalorder %s10, 3
    %p157 = pnand %p155, %p156
    %p158 = pneg %p157
    // Predicated region
    $region25: #{conv_block_forward.2} parent=5 // pred_check
      _
    $region26: #{conv_block_forward.2} parent=5 // pred_check_branch
      %160 = sbr.rel (%p157) target = $region28
    $region27: #{conv_block_forward.2} parent=5 // pred_region
      %s161 = ssub.s32 %s10, 1
      %p162 = scmp.lt.s32.totalorder %s19, 1
      %s163 = scalar_select %p162, %s19, 1
      %s164 = smul.addr %s163, 54
      %s165 = smul.addr %s164, 4
      %s166 = scalar_lea.vmem %s0, %s165
      %p167 = pneg %p48
      %p168 = pneg %p45
      %p169 = pneg %p69
      %p170 = pneg %p66
      %p171 = pneg %p97
      %p172 = pneg %p94
      %s173 = smul.u32 32, %s20
      %p174 = scmp.lt.s32.totalorder %s19, 1
      %s175 = scalar_select %p174, %s19, 1
      %p176 = scmp.lt.s32.totalorder %s173, 31
      %s177 = scalar_select %p176, %s173, 31
      %s178 = smul.addr %s175, 32
      %s179 = sadd.s32 %s177, %s178
      %s180 = smul.addr %s179, 4
      %s181 = scalar_lea.vmem %s2, %s180
      %p182 = pneg %p125
      %p183 = pneg %p122
      %p184 = scmp.lt.s32.totalorder %s19, 1
      %s185 = scalar_select %p184, %s19, 1
      %p186 = scmp.lt.s32.totalorder %s20, 0
      %s187 = scalar_select %p186, %s20, 0
      %s188 = sadd.s32 %s187, %s185
      %s189 = smul.addr %s188, 2
      %s190 = scalar_lea.vmem %s3, %s189
      %p191 = scmp.lt.s32.totalorder %s19, 1
      %s192 = scalar_select %p191, %s19, 1
      %s193 = smul.addr %s192, 54
      %s194 = smul.addr %s193, 4
      %s195 = scalar_lea.vmem %s0, %s194
      %s196 = smul.u32 32, %s20
      %p197 = scmp.lt.s32.totalorder %s19, 1
      %s198 = scalar_select %p197, %s19, 1
      %p199 = scmp.lt.s32.totalorder %s196, 31
      %s200 = scalar_select %p199, %s196, 31
      %s201 = smul.addr %s198, 32
      %s202 = sadd.s32 %s200, %s201
      %s203 = smul.addr %s202, 4
      %s204 = scalar_lea.vmem %s2, %s203
      %s205 = smul.u32 32, %s20
      %p206 = scmp.lt.s32.totalorder %s19, 1
      %s207 = scalar_select %p206, %s19, 1
      %p208 = scmp.lt.s32.totalorder %s20, 0
      %s209 = scalar_select %p208, %s20, 0
      %s210 = sadd.s32 %s209, %s207
      %s211 = smul.addr %s210, 2
      %s212 = scalar_lea.vmem %s3, %s211
      %s214 = smul.u32 %s20, 16
      %s215 = smul.u32 %s214, 3
      %s216 = smul.addr %s215, 4
      %s217 = scalar_lea.vmem %s195, %s216
      %v218 = vld [vmem:[%s217] sm:$0xf]
      %v219 = vld [vmem:[%s217 + $0x4] sm:$0xf]
      %v220 = vld [vmem:[%s217 + $0xc] sm:$0xf]
      %v221 = vld [vmem:[%s217 + $0x10] sm:$0xf]
      %v222 = vld [vmem:[%s217 + $0x18] sm:$0xf]
      %v223 = vld [vmem:[%s217 + $0x1c] sm:$0xf]
      %v224 = vld [vmem:[%s217 + $0x24] sm:$0xf]
      %v225 = vld [vmem:[%s217 + $0x28] sm:$0xf]
      %v226 = vld [vmem:[%s217 + $0x30] sm:$0xf]
      %v227 = vld [vmem:[%s217 + $0x34] sm:$0xf]
      %v228 = vld [vmem:[%s217 + $0x3c] sm:$0xf]
      %v229 = vld [vmem:[%s217 + $0x40] sm:$0xf]
      %v230 = vld [vmem:[%s217 + $0x48] sm:$0xf]
      %v231 = vld [vmem:[%s217 + $0x4c] sm:$0xf]
      %v232 = vld [vmem:[%s217 + $0x54] sm:$0xf]
      %v233 = vld [vmem:[%s217 + $0x58] sm:$0xf]
      %v234 = vld [vmem:[%s217 + $0x60] sm:$0xf]
      %v235 = vld [vmem:[%s217 + $0x64] sm:$0xf]
      %v236 = vld [vmem:[%s217 + $0x6c] sm:$0xf]
      %v237 = vld [vmem:[%s217 + $0x70] sm:$0xf]
      %v238 = vld [vmem:[%s217 + $0x78] sm:$0xf]
      %v239 = vld [vmem:[%s217 + $0x7c] sm:$0xf]
      %v240 = vld [vmem:[%s217 + $0x84] sm:$0xf]
      %v241 = vld [vmem:[%s217 + $0x88] sm:$0xf]
      %v242 = vld [vmem:[%s217 + $0x90] sm:$0xf]
      %v243 = vld [vmem:[%s217 + $0x94] sm:$0xf]
      %v244 = vld [vmem:[%s217 + $0x9c] sm:$0xf]
      %v245 = vld [vmem:[%s217 + $0xa0] sm:$0xf]
      %v246 = vld [vmem:[%s217 + $0xa8] sm:$0xf]
      %v247 = vld [vmem:[%s217 + $0xac] sm:$0xf]
      %v248 = vld [vmem:[%s217 + $0xb4] sm:$0xf]
      %v249 = vld [vmem:[%s217 + $0xb8] sm:$0xf]
      %v250 = vld [vmem:[%s217 + $0x8] sm:$0x1]
      %v251 = vld [vmem:[%s217 + $0x14] sm:$0x1]
      %v252 = vld [vmem:[%s217 + $0x20] sm:$0x1]
      %v253 = vld [vmem:[%s217 + $0x2c] sm:$0x1]
      %v254 = vld [vmem:[%s217 + $0x38] sm:$0x1]
      %v255 = vld [vmem:[%s217 + $0x44] sm:$0x1]
      %v256 = vld [vmem:[%s217 + $0x50] sm:$0x1]
      %v257 = vld [vmem:[%s217 + $0x5c] sm:$0x1]
      %v258 = vld [vmem:[%s217 + $0x68] sm:$0x1]
      %v259 = vld [vmem:[%s217 + $0x74] sm:$0x1]
      %v260 = vld [vmem:[%s217 + $0x80] sm:$0x1]
      %v261 = vld [vmem:[%s217 + $0x8c] sm:$0x1]
      %v262 = vld [vmem:[%s217 + $0x98] sm:$0x1]
      %v263 = vld [vmem:[%s217 + $0xa4] sm:$0x1]
      %v264 = vld [vmem:[%s217 + $0xb0] sm:$0x1]
      %v265 = vld [vmem:[%s217 + $0xbc] sm:$0x1]
      %v266 = vld [vmem:[%s217] sm:$0xe]
      %v267 = vld [vmem:[%s217 + $0xc] sm:$0xe]
      %v268 = vld [vmem:[%s217 + $0x18] sm:$0xe]
      %v269 = vld [vmem:[%s217 + $0x24] sm:$0xe]
      %v270 = vld [vmem:[%s217 + $0x30] sm:$0xe]
      %v271 = vld [vmem:[%s217 + $0x3c] sm:$0xe]
      %v272 = vld [vmem:[%s217 + $0x48] sm:$0xe]
      %v273 = vld [vmem:[%s217 + $0x54] sm:$0xe]
      %v274 = vld [vmem:[%s217 + $0x60] sm:$0xe]
      %v275 = vld [vmem:[%s217 + $0x6c] sm:$0xe]
      %v276 = vld [vmem:[%s217 + $0x78] sm:$0xe]
      %v277 = vld [vmem:[%s217 + $0x84] sm:$0xe]
      %v278 = vld [vmem:[%s217 + $0x90] sm:$0xe]
      %v279 = vld [vmem:[%s217 + $0x9c] sm:$0xe]
      %v280 = vld [vmem:[%s217 + $0xa8] sm:$0xe]
      %v281 = vld [vmem:[%s217 + $0xb4] sm:$0xe]
      %s282 = sadd.s32 %s214, 1
      %s283 = smul.u32 %s282, 3
      %s284 = smul.addr %s283, 4
      %s285 = scalar_lea.vmem %s195, %s284
      %v286 = vld [vmem:[%s285] sm:$0xf]
      %v287 = vld [vmem:[%s285 + $0x4] sm:$0xf]
      %v288 = vld [vmem:[%s285 + $0xc] sm:$0xf]
      %v289 = vld [vmem:[%s285 + $0x10] sm:$0xf]
      %v290 = vld [vmem:[%s285 + $0x18] sm:$0xf]
      %v291 = vld [vmem:[%s285 + $0x1c] sm:$0xf]
      %v292 = vld [vmem:[%s285 + $0x24] sm:$0xf]
      %v293 = vld [vmem:[%s285 + $0x28] sm:$0xf]
      %v294 = vld [vmem:[%s285 + $0x30] sm:$0xf]
      %v295 = vld [vmem:[%s285 + $0x34] sm:$0xf]
      %v296 = vld [vmem:[%s285 + $0x3c] sm:$0xf]
      %v297 = vld [vmem:[%s285 + $0x40] sm:$0xf]
      %v298 = vld [vmem:[%s285 + $0x48] sm:$0xf]
      %v299 = vld [vmem:[%s285 + $0x4c] sm:$0xf]
      %v300 = vld [vmem:[%s285 + $0x54] sm:$0xf]
      %v301 = vld [vmem:[%s285 + $0x58] sm:$0xf]
      %v302 = vld [vmem:[%s285 + $0x60] sm:$0xf]
      %v303 = vld [vmem:[%s285 + $0x64] sm:$0xf]
      %v304 = vld [vmem:[%s285 + $0x6c] sm:$0xf]
      %v305 = vld [vmem:[%s285 + $0x70] sm:$0xf]
      %v306 = vld [vmem:[%s285 + $0x78] sm:$0xf]
      %v307 = vld [vmem:[%s285 + $0x7c] sm:$0xf]
      %v308 = vld [vmem:[%s285 + $0x84] sm:$0xf]
      %v309 = vld [vmem:[%s285 + $0x88] sm:$0xf]
      %v310 = vld [vmem:[%s285 + $0x90] sm:$0xf]
      %v311 = vld [vmem:[%s285 + $0x94] sm:$0xf]
      %v312 = vld [vmem:[%s285 + $0x9c] sm:$0xf]
      %v313 = vld [vmem:[%s285 + $0xa0] sm:$0xf]
      %v314 = vld [vmem:[%s285 + $0xa8] sm:$0xf]
      %v315 = vld [vmem:[%s285 + $0xac] sm:$0xf]
      %v316 = vld [vmem:[%s285 + $0xb4] sm:$0xf]
      %v317 = vld [vmem:[%s285 + $0xb8] sm:$0xf]
      %v318 = vld [vmem:[%s285 + $0x8] sm:$0x1]
      %v319 = vld [vmem:[%s285 + $0x14] sm:$0x1]
      %v320 = vld [vmem:[%s285 + $0x20] sm:$0x1]
      %v321 = vld [vmem:[%s285 + $0x2c] sm:$0x1]
      %v322 = vld [vmem:[%s285 + $0x38] sm:$0x1]
      %v323 = vld [vmem:[%s285 + $0x44] sm:$0x1]
      %v324 = vld [vmem:[%s285 + $0x50] sm:$0x1]
      %v325 = vld [vmem:[%s285 + $0x5c] sm:$0x1]
      %v326 = vld [vmem:[%s285 + $0x68] sm:$0x1]
      %v327 = vld [vmem:[%s285 + $0x74] sm:$0x1]
      %v328 = vld [vmem:[%s285 + $0x80] sm:$0x1]
      %v329 = vld [vmem:[%s285 + $0x8c] sm:$0x1]
      %v330 = vld [vmem:[%s285 + $0x98] sm:$0x1]
      %v331 = vld [vmem:[%s285 + $0xa4] sm:$0x1]
      %v332 = vld [vmem:[%s285 + $0xb0] sm:$0x1]
      %v333 = vld [vmem:[%s285 + $0xbc] sm:$0x1]
      %v334 = vld [vmem:[%s285] sm:$0xe]
      %v335 = vld [vmem:[%s285 + $0xc] sm:$0xe]
      %v336 = vld [vmem:[%s285 + $0x18] sm:$0xe]
      %v337 = vld [vmem:[%s285 + $0x24] sm:$0xe]
      %v338 = vld [vmem:[%s285 + $0x30] sm:$0xe]
      %v339 = vld [vmem:[%s285 + $0x3c] sm:$0xe]
      %v340 = vld [vmem:[%s285 + $0x48] sm:$0xe]
      %v341 = vld [vmem:[%s285 + $0x54] sm:$0xe]
      %v342 = vld [vmem:[%s285 + $0x60] sm:$0xe]
      %v343 = vld [vmem:[%s285 + $0x6c] sm:$0xe]
      %v344 = vld [vmem:[%s285 + $0x78] sm:$0xe]
      %v345 = vld [vmem:[%s285 + $0x84] sm:$0xe]
      %v346 = vld [vmem:[%s285 + $0x90] sm:$0xe]
      %v347 = vld [vmem:[%s285 + $0x9c] sm:$0xe]
      %v348 = vld [vmem:[%s285 + $0xa8] sm:$0xe]
      %v349 = vld [vmem:[%s285 + $0xb4] sm:$0xe]
      %s350 = sadd.s32 %s214, 2
      %s351 = smul.u32 %s350, 3
      %s352 = smul.addr %s351, 4
      %s353 = scalar_lea.vmem %s195, %s352
      %v354 = vld [vmem:[%s353] sm:$0xf]
      %v355 = vld [vmem:[%s353 + $0x4] sm:$0xf]
      %v356 = vld [vmem:[%s353 + $0xc] sm:$0xf]
      %v357 = vld [vmem:[%s353 + $0x10] sm:$0xf]
      %v358 = vld [vmem:[%s353 + $0x18] sm:$0xf]
      %v359 = vld [vmem:[%s353 + $0x1c] sm:$0xf]
      %v360 = vld [vmem:[%s353 + $0x24] sm:$0xf]
      %v361 = vld [vmem:[%s353 + $0x28] sm:$0xf]
      %v362 = vld [vmem:[%s353 + $0x30] sm:$0xf]
      %v363 = vld [vmem:[%s353 + $0x34] sm:$0xf]
      %v364 = vld [vmem:[%s353 + $0x3c] sm:$0xf]
      %v365 = vld [vmem:[%s353 + $0x40] sm:$0xf]
      %v366 = vld [vmem:[%s353 + $0x48] sm:$0xf]
      %v367 = vld [vmem:[%s353 + $0x4c] sm:$0xf]
      %v368 = vld [vmem:[%s353 + $0x54] sm:$0xf]
      %v369 = vld [vmem:[%s353 + $0x58] sm:$0xf]
      %v370 = vld [vmem:[%s353 + $0x60] sm:$0xf]
      %v371 = vld [vmem:[%s353 + $0x64] sm:$0xf]
      %v372 = vld [vmem:[%s353 + $0x6c] sm:$0xf]
      %v373 = vld [vmem:[%s353 + $0x70] sm:$0xf]
      %v374 = vld [vmem:[%s353 + $0x78] sm:$0xf]
      %v375 = vld [vmem:[%s353 + $0x7c] sm:$0xf]
      %v376 = vld [vmem:[%s353 + $0x84] sm:$0xf]
      %v377 = vld [vmem:[%s353 + $0x88] sm:$0xf]
      %v378 = vld [vmem:[%s353 + $0x90] sm:$0xf]
      %v379 = vld [vmem:[%s353 + $0x94] sm:$0xf]
      %v380 = vld [vmem:[%s353 + $0x9c] sm:$0xf]
      %v381 = vld [vmem:[%s353 + $0xa0] sm:$0xf]
      %v382 = vld [vmem:[%s353 + $0xa8] sm:$0xf]
      %v383 = vld [vmem:[%s353 + $0xac] sm:$0xf]
      %v384 = vld [vmem:[%s353 + $0xb4] sm:$0xf]
      %v385 = vld [vmem:[%s353 + $0xb8] sm:$0xf]
      %v386 = vld [vmem:[%s353 + $0x8] sm:$0x1]
      %v387 = vld [vmem:[%s353 + $0x14] sm:$0x1]
      %v388 = vld [vmem:[%s353 + $0x20] sm:$0x1]
      %v389 = vld [vmem:[%s353 + $0x2c] sm:$0x1]
      %v390 = vld [vmem:[%s353 + $0x38] sm:$0x1]
      %v391 = vld [vmem:[%s353 + $0x44] sm:$0x1]
      %v392 = vld [vmem:[%s353 + $0x50] sm:$0x1]
      %v393 = vld [vmem:[%s353 + $0x5c] sm:$0x1]
      %v394 = vld [vmem:[%s353 + $0x68] sm:$0x1]
      %v395 = vld [vmem:[%s353 + $0x74] sm:$0x1]
      %v396 = vld [vmem:[%s353 + $0x80] sm:$0x1]
      %v397 = vld [vmem:[%s353 + $0x8c] sm:$0x1]
      %v398 = vld [vmem:[%s353 + $0x98] sm:$0x1]
      %v399 = vld [vmem:[%s353 + $0xa4] sm:$0x1]
      %v400 = vld [vmem:[%s353 + $0xb0] sm:$0x1]
      %v401 = vld [vmem:[%s353 + $0xbc] sm:$0x1]
      %v402 = vld [vmem:[%s353] sm:$0xe]
      %v403 = vld [vmem:[%s353 + $0xc] sm:$0xe]
      %v404 = vld [vmem:[%s353 + $0x18] sm:$0xe]
      %v405 = vld [vmem:[%s353 + $0x24] sm:$0xe]
      %v406 = vld [vmem:[%s353 + $0x30] sm:$0xe]
      %v407 = vld [vmem:[%s353 + $0x3c] sm:$0xe]
      %v408 = vld [vmem:[%s353 + $0x48] sm:$0xe]
      %v409 = vld [vmem:[%s353 + $0x54] sm:$0xe]
      %v410 = vld [vmem:[%s353 + $0x60] sm:$0xe]
      %v411 = vld [vmem:[%s353 + $0x6c] sm:$0xe]
      %v412 = vld [vmem:[%s353 + $0x78] sm:$0xe]
      %v413 = vld [vmem:[%s353 + $0x84] sm:$0xe]
      %v414 = vld [vmem:[%s353 + $0x90] sm:$0xe]
      %v415 = vld [vmem:[%s353 + $0x9c] sm:$0xe]
      %v416 = vld [vmem:[%s353 + $0xa8] sm:$0xe]
      %v417 = vld [vmem:[%s353 + $0xb4] sm:$0xe]
      %v450 = vunpack.c.l.b16 %v218
      %v451 = vunpack.c.l.b16 %v219
      %v452 = vunpack.c.l.b16 %v220
      %v453 = vunpack.c.l.b16 %v221
      %v454 = vunpack.c.l.b16 %v222
      %v455 = vunpack.c.l.b16 %v223
      %v456 = vunpack.c.l.b16 %v224
      %v457 = vunpack.c.l.b16 %v225
      %v458 = vunpack.c.l.b16 %v226
      %v459 = vunpack.c.l.b16 %v227
      %v460 = vunpack.c.l.b16 %v228
      %v461 = vunpack.c.l.b16 %v229
      %v462 = vunpack.c.l.b16 %v230
      %v463 = vunpack.c.l.b16 %v231
      %v464 = vunpack.c.l.b16 %v232
      %v465 = vunpack.c.l.b16 %v233
      %v466 = vunpack.c.l.b16 %v234
      %v467 = vunpack.c.l.b16 %v235
      %v468 = vunpack.c.l.b16 %v236
      %v469 = vunpack.c.l.b16 %v237
      %v470 = vunpack.c.l.b16 %v238
      %v471 = vunpack.c.l.b16 %v239
      %v472 = vunpack.c.l.b16 %v240
      %v473 = vunpack.c.l.b16 %v241
      %v474 = vunpack.c.l.b16 %v242
      %v475 = vunpack.c.l.b16 %v243
      %v476 = vunpack.c.l.b16 %v244
      %v477 = vunpack.c.l.b16 %v245
      %v478 = vunpack.c.l.b16 %v246
      %v479 = vunpack.c.l.b16 %v247
      %v480 = vunpack.c.l.b16 %v248
      %v481 = vunpack.c.l.b16 %v249
      %v482 = vpack.c.b16 %v451, %v450
      %v483 = vpack.c.b16 %v453, %v452
      %v484 = vpack.c.b16 %v455, %v454
      %v485 = vpack.c.b16 %v457, %v456
      %v486 = vpack.c.b16 %v459, %v458
      %v487 = vpack.c.b16 %v461, %v460
      %v488 = vpack.c.b16 %v463, %v462
      %v489 = vpack.c.b16 %v465, %v464
      %v490 = vpack.c.b16 %v467, %v466
      %v491 = vpack.c.b16 %v469, %v468
      %v492 = vpack.c.b16 %v471, %v470
      %v493 = vpack.c.b16 %v473, %v472
      %v494 = vpack.c.b16 %v475, %v474
      %v495 = vpack.c.b16 %v477, %v476
      %v496 = vpack.c.b16 %v479, %v478
      %v497 = vpack.c.b16 %v481, %v480
      %v514 = vunpack.c.l.b16 %v250
      %v515 = vunpack.c.l.b16 %v251
      %v516 = vunpack.c.l.b16 %v252
      %v517 = vunpack.c.l.b16 %v253
      %v518 = vunpack.c.l.b16 %v254
      %v519 = vunpack.c.l.b16 %v255
      %v520 = vunpack.c.l.b16 %v256
      %v521 = vunpack.c.l.b16 %v257
      %v522 = vunpack.c.l.b16 %v258
      %v523 = vunpack.c.l.b16 %v259
      %v524 = vunpack.c.l.b16 %v260
      %v525 = vunpack.c.l.b16 %v261
      %v526 = vunpack.c.l.b16 %v262
      %v527 = vunpack.c.l.b16 %v263
      %v528 = vunpack.c.l.b16 %v264
      %v529 = vunpack.c.l.b16 %v265
      %v530 = vpack.c.b16 %v514, %v514
      %v531 = vpack.c.b16 %v515, %v515
      %v532 = vpack.c.b16 %v516, %v516
      %v533 = vpack.c.b16 %v517, %v517
      %v534 = vpack.c.b16 %v518, %v518
      %v535 = vpack.c.b16 %v519, %v519
      %v536 = vpack.c.b16 %v520, %v520
      %v537 = vpack.c.b16 %v521, %v521
      %v538 = vpack.c.b16 %v522, %v522
      %v539 = vpack.c.b16 %v523, %v523
      %v540 = vpack.c.b16 %v524, %v524
      %v541 = vpack.c.b16 %v525, %v525
      %v542 = vpack.c.b16 %v526, %v526
      %v543 = vpack.c.b16 %v527, %v527
      %v544 = vpack.c.b16 %v528, %v528
      %v545 = vpack.c.b16 %v529, %v529
      %vm546 = vsmask.f32 7424
      %v548 = vshrl.u32 %v482, 16
      %v550 = vshll.u32 %v482, 16
      %v552 = vrot.slane %v550, 1
      %v553 = vor.u32 %v548, %v552
      %v555 = vshll.u32 %v530, 16
      %v557 = vrot.slane %v555, 1
      %v558 = vsel %vm546, %v553, %v557
      %v560 = vshrl.u32 %v483, 16
      %v562 = vshll.u32 %v483, 16
      %v564 = vrot.slane %v562, 1
      %v565 = vor.u32 %v560, %v564
      %v567 = vshll.u32 %v531, 16
      %v569 = vrot.slane %v567, 1
      %v570 = vsel %vm546, %v565, %v569
      %v572 = vshrl.u32 %v484, 16
      %v574 = vshll.u32 %v484, 16
      %v576 = vrot.slane %v574, 1
      %v577 = vor.u32 %v572, %v576
      %v579 = vshll.u32 %v532, 16
      %v581 = vrot.slane %v579, 1
      %v582 = vsel %vm546, %v577, %v581
      %v584 = vshrl.u32 %v485, 16
      %v586 = vshll.u32 %v485, 16
      %v588 = vrot.slane %v586, 1
      %v589 = vor.u32 %v584, %v588
      %v591 = vshll.u32 %v533, 16
      %v593 = vrot.slane %v591, 1
      %v594 = vsel %vm546, %v589, %v593
      %v596 = vshrl.u32 %v486, 16
      %v598 = vshll.u32 %v486, 16
      %v600 = vrot.slane %v598, 1
      %v601 = vor.u32 %v596, %v600
      %v603 = vshll.u32 %v534, 16
      %v605 = vrot.slane %v603, 1
      %v606 = vsel %vm546, %v601, %v605
      %v608 = vshrl.u32 %v487, 16
      %v610 = vshll.u32 %v487, 16
      %v612 = vrot.slane %v610, 1
      %v613 = vor.u32 %v608, %v612
      %v615 = vshll.u32 %v535, 16
      %v617 = vrot.slane %v615, 1
      %v618 = vsel %vm546, %v613, %v617
      %v620 = vshrl.u32 %v488, 16
      %v622 = vshll.u32 %v488, 16
      %v624 = vrot.slane %v622, 1
      %v625 = vor.u32 %v620, %v624
      %v627 = vshll.u32 %v536, 16
      %v629 = vrot.slane %v627, 1
      %v630 = vsel %vm546, %v625, %v629
      %v632 = vshrl.u32 %v489, 16
      %v634 = vshll.u32 %v489, 16
      %v636 = vrot.slane %v634, 1
      %v637 = vor.u32 %v632, %v636
      %v639 = vshll.u32 %v537, 16
      %v641 = vrot.slane %v639, 1
      %v642 = vsel %vm546, %v637, %v641
      %v644 = vshrl.u32 %v490, 16
      %v646 = vshll.u32 %v490, 16
      %v648 = vrot.slane %v646, 1
      %v649 = vor.u32 %v644, %v648
      %v651 = vshll.u32 %v538, 16
      %v653 = vrot.slane %v651, 1
      %v654 = vsel %vm546, %v649, %v653
      %v656 = vshrl.u32 %v491, 16
      %v658 = vshll.u32 %v491, 16
      %v660 = vrot.slane %v658, 1
      %v661 = vor.u32 %v656, %v660
      %v663 = vshll.u32 %v539, 16
      %v665 = vrot.slane %v663, 1
      %v666 = vsel %vm546, %v661, %v665
      %v668 = vshrl.u32 %v492, 16
      %v670 = vshll.u32 %v492, 16
      %v672 = vrot.slane %v670, 1
      %v673 = vor.u32 %v668, %v672
      %v675 = vshll.u32 %v540, 16
      %v677 = vrot.slane %v675, 1
      %v678 = vsel %vm546, %v673, %v677
      %v680 = vshrl.u32 %v493, 16
      %v682 = vshll.u32 %v493, 16
      %v684 = vrot.slane %v682, 1
      %v685 = vor.u32 %v680, %v684
      %v687 = vshll.u32 %v541, 16
      %v689 = vrot.slane %v687, 1
      %v690 = vsel %vm546, %v685, %v689
      %v692 = vshrl.u32 %v494, 16
      %v694 = vshll.u32 %v494, 16
      %v696 = vrot.slane %v694, 1
      %v697 = vor.u32 %v692, %v696
      %v699 = vshll.u32 %v542, 16
      %v701 = vrot.slane %v699, 1
      %v702 = vsel %vm546, %v697, %v701
      %v704 = vshrl.u32 %v495, 16
      %v706 = vshll.u32 %v495, 16
      %v708 = vrot.slane %v706, 1
      %v709 = vor.u32 %v704, %v708
      %v711 = vshll.u32 %v543, 16
      %v713 = vrot.slane %v711, 1
      %v714 = vsel %vm546, %v709, %v713
      %v716 = vshrl.u32 %v496, 16
      %v718 = vshll.u32 %v496, 16
      %v720 = vrot.slane %v718, 1
      %v721 = vor.u32 %v716, %v720
      %v723 = vshll.u32 %v544, 16
      %v725 = vrot.slane %v723, 1
      %v726 = vsel %vm546, %v721, %v725
      %v728 = vshrl.u32 %v497, 16
      %v730 = vshll.u32 %v497, 16
      %v732 = vrot.slane %v730, 1
      %v733 = vor.u32 %v728, %v732
      %v735 = vshll.u32 %v545, 16
      %v737 = vrot.slane %v735, 1
      %v738 = vsel %vm546, %v733, %v737
      %739 = vrot.lane.b32.xlu0 %v558, 4
      %v740 = vpop.permute.xlu0 %739
      %741 = vrot.lane.b32.xlu0 %v570, 4
      %v742 = vpop.permute.xlu0 %741
      %743 = vrot.lane.b32.xlu0 %v582, 4
      %v744 = vpop.permute.xlu0 %743
      %745 = vrot.lane.b32.xlu0 %v594, 4
      %v746 = vpop.permute.xlu0 %745
      %747 = vrot.lane.b32.xlu0 %v606, 4
      %v748 = vpop.permute.xlu0 %747
      %749 = vrot.lane.b32.xlu0 %v618, 4
      %v750 = vpop.permute.xlu0 %749
      %751 = vrot.lane.b32.xlu0 %v630, 4
      %v752 = vpop.permute.xlu0 %751
      %753 = vrot.lane.b32.xlu0 %v642, 4
      %v754 = vpop.permute.xlu0 %753
      %755 = vrot.lane.b32.xlu0 %v654, 4
      %v756 = vpop.permute.xlu0 %755
      %757 = vrot.lane.b32.xlu0 %v666, 4
      %v758 = vpop.permute.xlu0 %757
      %759 = vrot.lane.b32.xlu0 %v678, 4
      %v760 = vpop.permute.xlu0 %759
      %761 = vrot.lane.b32.xlu0 %v690, 4
      %v762 = vpop.permute.xlu0 %761
      %763 = vrot.lane.b32.xlu0 %v702, 4
      %v764 = vpop.permute.xlu0 %763
      %765 = vrot.lane.b32.xlu0 %v714, 4
      %v766 = vpop.permute.xlu0 %765
      %767 = vrot.lane.b32.xlu0 %v726, 4
      %v768 = vpop.permute.xlu0 %767
      %769 = vrot.lane.b32.xlu0 %v738, 4
      %v770 = vpop.permute.xlu0 %769
      %v787 = vunpack.c.l.b16 %v266
      %v788 = vunpack.c.l.b16 %v267
      %v789 = vunpack.c.l.b16 %v268
      %v790 = vunpack.c.l.b16 %v269
      %v791 = vunpack.c.l.b16 %v270
      %v792 = vunpack.c.l.b16 %v271
      %v793 = vunpack.c.l.b16 %v272
      %v794 = vunpack.c.l.b16 %v273
      %v795 = vunpack.c.l.b16 %v274
      %v796 = vunpack.c.l.b16 %v275
      %v797 = vunpack.c.l.b16 %v276
      %v798 = vunpack.c.l.b16 %v277
      %v799 = vunpack.c.l.b16 %v278
      %v800 = vunpack.c.l.b16 %v279
      %v801 = vunpack.c.l.b16 %v280
      %v802 = vunpack.c.l.b16 %v281
      %v803 = vpack.c.b16 %v451, %v787
      %v804 = vpack.c.b16 %v453, %v788
      %v805 = vpack.c.b16 %v455, %v789
      %v806 = vpack.c.b16 %v457, %v790
      %v807 = vpack.c.b16 %v459, %v791
      %v808 = vpack.c.b16 %v461, %v792
      %v809 = vpack.c.b16 %v463, %v793
      %v810 = vpack.c.b16 %v465, %v794
      %v811 = vpack.c.b16 %v467, %v795
      %v812 = vpack.c.b16 %v469, %v796
      %v813 = vpack.c.b16 %v471, %v797
      %v814 = vpack.c.b16 %v473, %v798
      %v815 = vpack.c.b16 %v475, %v799
      %v816 = vpack.c.b16 %v477, %v800
      %v817 = vpack.c.b16 %v479, %v801
      %v818 = vpack.c.b16 %v481, %v802
      %vm819 = vcmask 1046528
      %v820 = vrot.slane %v803, 1
      %v821 = vrot.slane %v530, 1
      %v822 = vsel %vm819, %v820, %v821
      %v823 = vrot.slane %v804, 1
      %v824 = vrot.slane %v531, 1
      %v825 = vsel %vm819, %v823, %v824
      %v826 = vrot.slane %v805, 1
      %v827 = vrot.slane %v532, 1
      %v828 = vsel %vm819, %v826, %v827
      %v829 = vrot.slane %v806, 1
      %v830 = vrot.slane %v533, 1
      %v831 = vsel %vm819, %v829, %v830
      %v832 = vrot.slane %v807, 1
      %v833 = vrot.slane %v534, 1
      %v834 = vsel %vm819, %v832, %v833
      %v835 = vrot.slane %v808, 1
      %v836 = vrot.slane %v535, 1
      %v837 = vsel %vm819, %v835, %v836
      %v838 = vrot.slane %v809, 1
      %v839 = vrot.slane %v536, 1
      %v840 = vsel %vm819, %v838, %v839
      %v841 = vrot.slane %v810, 1
      %v842 = vrot.slane %v537, 1
      %v843 = vsel %vm819, %v841, %v842
      %v844 = vrot.slane %v811, 1
      %v845 = vrot.slane %v538, 1
      %v846 = vsel %vm819, %v844, %v845
      %v847 = vrot.slane %v812, 1
      %v848 = vrot.slane %v539, 1
      %v849 = vsel %vm819, %v847, %v848
      %v850 = vrot.slane %v813, 1
      %v851 = vrot.slane %v540, 1
      %v852 = vsel %vm819, %v850, %v851
      %v853 = vrot.slane %v814, 1
      %v854 = vrot.slane %v541, 1
      %v855 = vsel %vm819, %v853, %v854
      %v856 = vrot.slane %v815, 1
      %v857 = vrot.slane %v542, 1
      %v858 = vsel %vm819, %v856, %v857
      %v859 = vrot.slane %v816, 1
      %v860 = vrot.slane %v543, 1
      %v861 = vsel %vm819, %v859, %v860
      %v862 = vrot.slane %v817, 1
      %v863 = vrot.slane %v544, 1
      %v864 = vsel %vm819, %v862, %v863
      %v865 = vrot.slane %v818, 1
      %v866 = vrot.slane %v545, 1
      %v867 = vsel %vm819, %v865, %v866
      %868 = vrot.lane.b32.xlu0 %v822, 8
      %v869 = vpop.permute.xlu0 %868
      %870 = vrot.lane.b32.xlu0 %v825, 8
      %v871 = vpop.permute.xlu0 %870
      %872 = vrot.lane.b32.xlu0 %v828, 8
      %v873 = vpop.permute.xlu0 %872
      %874 = vrot.lane.b32.xlu0 %v831, 8
      %v875 = vpop.permute.xlu0 %874
      %876 = vrot.lane.b32.xlu0 %v834, 8
      %v877 = vpop.permute.xlu0 %876
      %878 = vrot.lane.b32.xlu0 %v837, 8
      %v879 = vpop.permute.xlu0 %878
      %880 = vrot.lane.b32.xlu0 %v840, 8
      %v881 = vpop.permute.xlu0 %880
      %882 = vrot.lane.b32.xlu0 %v843, 8
      %v883 = vpop.permute.xlu0 %882
      %884 = vrot.lane.b32.xlu0 %v846, 8
      %v885 = vpop.permute.xlu0 %884
      %886 = vrot.lane.b32.xlu0 %v849, 8
      %v887 = vpop.permute.xlu0 %886
      %888 = vrot.lane.b32.xlu0 %v852, 8
      %v889 = vpop.permute.xlu0 %888
      %890 = vrot.lane.b32.xlu0 %v855, 8
      %v891 = vpop.permute.xlu0 %890
      %892 = vrot.lane.b32.xlu0 %v858, 8
      %v893 = vpop.permute.xlu0 %892
      %894 = vrot.lane.b32.xlu0 %v861, 8
      %v895 = vpop.permute.xlu0 %894
      %896 = vrot.lane.b32.xlu0 %v864, 8
      %v897 = vpop.permute.xlu0 %896
      %898 = vrot.lane.b32.xlu0 %v867, 8
      %v899 = vpop.permute.xlu0 %898
      %v932 = vunpack.c.l.b16 %v286
      %v933 = vunpack.c.l.b16 %v287
      %v934 = vunpack.c.l.b16 %v288
      %v935 = vunpack.c.l.b16 %v289
      %v936 = vunpack.c.l.b16 %v290
      %v937 = vunpack.c.l.b16 %v291
      %v938 = vunpack.c.l.b16 %v292
      %v939 = vunpack.c.l.b16 %v293
      %v940 = vunpack.c.l.b16 %v294
      %v941 = vunpack.c.l.b16 %v295
      %v942 = vunpack.c.l.b16 %v296
      %v943 = vunpack.c.l.b16 %v297
      %v944 = vunpack.c.l.b16 %v298
      %v945 = vunpack.c.l.b16 %v299
      %v946 = vunpack.c.l.b16 %v300
      %v947 = vunpack.c.l.b16 %v301
      %v948 = vunpack.c.l.b16 %v302
      %v949 = vunpack.c.l.b16 %v303
      %v950 = vunpack.c.l.b16 %v304
      %v951 = vunpack.c.l.b16 %v305
      %v952 = vunpack.c.l.b16 %v306
      %v953 = vunpack.c.l.b16 %v307
      %v954 = vunpack.c.l.b16 %v308
      %v955 = vunpack.c.l.b16 %v309
      %v956 = vunpack.c.l.b16 %v310
      %v957 = vunpack.c.l.b16 %v311
      %v958 = vunpack.c.l.b16 %v312
      %v959 = vunpack.c.l.b16 %v313
      %v960 = vunpack.c.l.b16 %v314
      %v961 = vunpack.c.l.b16 %v315
      %v962 = vunpack.c.l.b16 %v316
      %v963 = vunpack.c.l.b16 %v317
      %v964 = vpack.c.b16 %v933, %v932
      %v965 = vpack.c.b16 %v935, %v934
      %v966 = vpack.c.b16 %v937, %v936
      %v967 = vpack.c.b16 %v939, %v938
      %v968 = vpack.c.b16 %v941, %v940
      %v969 = vpack.c.b16 %v943, %v942
      %v970 = vpack.c.b16 %v945, %v944
      %v971 = vpack.c.b16 %v947, %v946
      %v972 = vpack.c.b16 %v949, %v948
      %v973 = vpack.c.b16 %v951, %v950
      %v974 = vpack.c.b16 %v953, %v952
      %v975 = vpack.c.b16 %v955, %v954
      %v976 = vpack.c.b16 %v957, %v956
      %v977 = vpack.c.b16 %v959, %v958
      %v978 = vpack.c.b16 %v961, %v960
      %v979 = vpack.c.b16 %v963, %v962
      %980 = vrot.lane.b32.xlu0 %v964, 12
      %v981 = vpop.permute.xlu0 %980
      %982 = vrot.lane.b32.xlu0 %v965, 12
      %v983 = vpop.permute.xlu0 %982
      %984 = vrot.lane.b32.xlu0 %v966, 12
      %v985 = vpop.permute.xlu0 %984
      %986 = vrot.lane.b32.xlu0 %v967, 12
      %v987 = vpop.permute.xlu0 %986
      %988 = vrot.lane.b32.xlu0 %v968, 12
      %v989 = vpop.permute.xlu0 %988
      %990 = vrot.lane.b32.xlu0 %v969, 12
      %v991 = vpop.permute.xlu0 %990
      %992 = vrot.lane.b32.xlu0 %v970, 12
      %v993 = vpop.permute.xlu0 %992
      %994 = vrot.lane.b32.xlu0 %v971, 12
      %v995 = vpop.permute.xlu0 %994
      %996 = vrot.lane.b32.xlu0 %v972, 12
      %v997 = vpop.permute.xlu0 %996
      %998 = vrot.lane.b32.xlu0 %v973, 12
      %v999 = vpop.permute.xlu0 %998
      %1000 = vrot.lane.b32.xlu0 %v974, 12
      %v1001 = vpop.permute.xlu0 %1000
      %1002 = vrot.lane.b32.xlu0 %v975, 12
      %v1003 = vpop.permute.xlu0 %1002
      %1004 = vrot.lane.b32.xlu0 %v976, 12
      %v1005 = vpop.permute.xlu0 %1004
      %1006 = vrot.lane.b32.xlu0 %v977, 12
      %v1007 = vpop.permute.xlu0 %1006
      %1008 = vrot.lane.b32.xlu0 %v978, 12
      %v1009 = vpop.permute.xlu0 %1008
      %1010 = vrot.lane.b32.xlu0 %v979, 12
      %v1011 = vpop.permute.xlu0 %1010
      %v1028 = vunpack.c.l.b16 %v318
      %v1029 = vunpack.c.l.b16 %v319
      %v1030 = vunpack.c.l.b16 %v320
      %v1031 = vunpack.c.l.b16 %v321
      %v1032 = vunpack.c.l.b16 %v322
      %v1033 = vunpack.c.l.b16 %v323
      %v1034 = vunpack.c.l.b16 %v324
      %v1035 = vunpack.c.l.b16 %v325
      %v1036 = vunpack.c.l.b16 %v326
      %v1037 = vunpack.c.l.b16 %v327
      %v1038 = vunpack.c.l.b16 %v328
      %v1039 = vunpack.c.l.b16 %v329
      %v1040 = vunpack.c.l.b16 %v330
      %v1041 = vunpack.c.l.b16 %v331
      %v1042 = vunpack.c.l.b16 %v332
      %v1043 = vunpack.c.l.b16 %v333
      %v1044 = vpack.c.b16 %v1028, %v1028
      %v1045 = vpack.c.b16 %v1029, %v1029
      %v1046 = vpack.c.b16 %v1030, %v1030
      %v1047 = vpack.c.b16 %v1031, %v1031
      %v1048 = vpack.c.b16 %v1032, %v1032
      %v1049 = vpack.c.b16 %v1033, %v1033
      %v1050 = vpack.c.b16 %v1034, %v1034
      %v1051 = vpack.c.b16 %v1035, %v1035
      %v1052 = vpack.c.b16 %v1036, %v1036
      %v1053 = vpack.c.b16 %v1037, %v1037
      %v1054 = vpack.c.b16 %v1038, %v1038
      %v1055 = vpack.c.b16 %v1039, %v1039
      %v1056 = vpack.c.b16 %v1040, %v1040
      %v1057 = vpack.c.b16 %v1041, %v1041
      %v1058 = vpack.c.b16 %v1042, %v1042
      %v1059 = vpack.c.b16 %v1043, %v1043
      %v1061 = vshrl.u32 %v964, 16
      %v1063 = vshll.u32 %v964, 16
      %v1065 = vrot.slane %v1063, 1
      %v1066 = vor.u32 %v1061, %v1065
      %v1068 = vshll.u32 %v1044, 16
      %v1070 = vrot.slane %v1068, 1
      %v1071 = vsel %vm546, %v1066, %v1070
      %v1073 = vshrl.u32 %v965, 16
      %v1075 = vshll.u32 %v965, 16
      %v1077 = vrot.slane %v1075, 1
      %v1078 = vor.u32 %v1073, %v1077
      %v1080 = vshll.u32 %v1045, 16
      %v1082 = vrot.slane %v1080, 1
      %v1083 = vsel %vm546, %v1078, %v1082
      %v1085 = vshrl.u32 %v966, 16
      %v1087 = vshll.u32 %v966, 16
      %v1089 = vrot.slane %v1087, 1
      %v1090 = vor.u32 %v1085, %v1089
      %v1092 = vshll.u32 %v1046, 16
      %v1094 = vrot.slane %v1092, 1
      %v1095 = vsel %vm546, %v1090, %v1094
      %v1097 = vshrl.u32 %v967, 16
      %v1099 = vshll.u32 %v967, 16
      %v1101 = vrot.slane %v1099, 1
      %v1102 = vor.u32 %v1097, %v1101
      %v1104 = vshll.u32 %v1047, 16
      %v1106 = vrot.slane %v1104, 1
      %v1107 = vsel %vm546, %v1102, %v1106
      %v1109 = vshrl.u32 %v968, 16
      %v1111 = vshll.u32 %v968, 16
      %v1113 = vrot.slane %v1111, 1
      %v1114 = vor.u32 %v1109, %v1113
      %v1116 = vshll.u32 %v1048, 16
      %v1118 = vrot.slane %v1116, 1
      %v1119 = vsel %vm546, %v1114, %v1118
      %v1121 = vshrl.u32 %v969, 16
      %v1123 = vshll.u32 %v969, 16
      %v1125 = vrot.slane %v1123, 1
      %v1126 = vor.u32 %v1121, %v1125
      %v1128 = vshll.u32 %v1049, 16
      %v1130 = vrot.slane %v1128, 1
      %v1131 = vsel %vm546, %v1126, %v1130
      %v1133 = vshrl.u32 %v970, 16
      %v1135 = vshll.u32 %v970, 16
      %v1137 = vrot.slane %v1135, 1
      %v1138 = vor.u32 %v1133, %v1137
      %v1140 = vshll.u32 %v1050, 16
      %v1142 = vrot.slane %v1140, 1
      %v1143 = vsel %vm546, %v1138, %v1142
      %v1145 = vshrl.u32 %v971, 16
      %v1147 = vshll.u32 %v971, 16
      %v1149 = vrot.slane %v1147, 1
      %v1150 = vor.u32 %v1145, %v1149
      %v1152 = vshll.u32 %v1051, 16
      %v1154 = vrot.slane %v1152, 1
      %v1155 = vsel %vm546, %v1150, %v1154
      %v1157 = vshrl.u32 %v972, 16
      %v1159 = vshll.u32 %v972, 16
      %v1161 = vrot.slane %v1159, 1
      %v1162 = vor.u32 %v1157, %v1161
      %v1164 = vshll.u32 %v1052, 16
      %v1166 = vrot.slane %v1164, 1
      %v1167 = vsel %vm546, %v1162, %v1166
      %v1169 = vshrl.u32 %v973, 16
      %v1171 = vshll.u32 %v973, 16
      %v1173 = vrot.slane %v1171, 1
      %v1174 = vor.u32 %v1169, %v1173
      %v1176 = vshll.u32 %v1053, 16
      %v1178 = vrot.slane %v1176, 1
      %v1179 = vsel %vm546, %v1174, %v1178
      %v1181 = vshrl.u32 %v974, 16
      %v1183 = vshll.u32 %v974, 16
      %v1185 = vrot.slane %v1183, 1
      %v1186 = vor.u32 %v1181, %v1185
      %v1188 = vshll.u32 %v1054, 16
      %v1190 = vrot.slane %v1188, 1
      %v1191 = vsel %vm546, %v1186, %v1190
      %v1193 = vshrl.u32 %v975, 16
      %v1195 = vshll.u32 %v975, 16
      %v1197 = vrot.slane %v1195, 1
      %v1198 = vor.u32 %v1193, %v1197
      %v1200 = vshll.u32 %v1055, 16
      %v1202 = vrot.slane %v1200, 1
      %v1203 = vsel %vm546, %v1198, %v1202
      %v1205 = vshrl.u32 %v976, 16
      %v1207 = vshll.u32 %v976, 16
      %v1209 = vrot.slane %v1207, 1
      %v1210 = vor.u32 %v1205, %v1209
      %v1212 = vshll.u32 %v1056, 16
      %v1214 = vrot.slane %v1212, 1
      %v1215 = vsel %vm546, %v1210, %v1214
      %v1217 = vshrl.u32 %v977, 16
      %v1219 = vshll.u32 %v977, 16
      %v1221 = vrot.slane %v1219, 1
      %v1222 = vor.u32 %v1217, %v1221
      %v1224 = vshll.u32 %v1057, 16
      %v1226 = vrot.slane %v1224, 1
      %v1227 = vsel %vm546, %v1222, %v1226
      %v1229 = vshrl.u32 %v978, 16
      %v1231 = vshll.u32 %v978, 16
      %v1233 = vrot.slane %v1231, 1
      %v1234 = vor.u32 %v1229, %v1233
      %v1236 = vshll.u32 %v1058, 16
      %v1238 = vrot.slane %v1236, 1
      %v1239 = vsel %vm546, %v1234, %v1238
      %v1241 = vshrl.u32 %v979, 16
      %v1243 = vshll.u32 %v979, 16
      %v1245 = vrot.slane %v1243, 1
      %v1246 = vor.u32 %v1241, %v1245
      %v1248 = vshll.u32 %v1059, 16
      %v1250 = vrot.slane %v1248, 1
      %v1251 = vsel %vm546, %v1246, %v1250
      %1252 = vrot.lane.b32.xlu0 %v1071, 16
      %v1253 = vpop.permute.xlu0 %1252
      %1254 = vrot.lane.b32.xlu0 %v1083, 16
      %v1255 = vpop.permute.xlu0 %1254
      %1256 = vrot.lane.b32.xlu0 %v1095, 16
      %v1257 = vpop.permute.xlu0 %1256
      %1258 = vrot.lane.b32.xlu0 %v1107, 16
      %v1259 = vpop.permute.xlu0 %1258
      %1260 = vrot.lane.b32.xlu0 %v1119, 16
      %v1261 = vpop.permute.xlu0 %1260
      %1262 = vrot.lane.b32.xlu0 %v1131, 16
      %v1263 = vpop.permute.xlu0 %1262
      %1264 = vrot.lane.b32.xlu0 %v1143, 16
      %v1265 = vpop.permute.xlu0 %1264
      %1266 = vrot.lane.b32.xlu0 %v1155, 16
      %v1267 = vpop.permute.xlu0 %1266
      %1268 = vrot.lane.b32.xlu0 %v1167, 16
      %v1269 = vpop.permute.xlu0 %1268
      %1270 = vrot.lane.b32.xlu0 %v1179, 16
      %v1271 = vpop.permute.xlu0 %1270
      %1272 = vrot.lane.b32.xlu0 %v1191, 16
      %v1273 = vpop.permute.xlu0 %1272
      %1274 = vrot.lane.b32.xlu0 %v1203, 16
      %v1275 = vpop.permute.xlu0 %1274
      %1276 = vrot.lane.b32.xlu0 %v1215, 16
      %v1277 = vpop.permute.xlu0 %1276
      %1278 = vrot.lane.b32.xlu0 %v1227, 16
      %v1279 = vpop.permute.xlu0 %1278
      %1280 = vrot.lane.b32.xlu0 %v1239, 16
      %v1281 = vpop.permute.xlu0 %1280
      %1282 = vrot.lane.b32.xlu0 %v1251, 16
      %v1283 = vpop.permute.xlu0 %1282
      %v1300 = vunpack.c.l.b16 %v334
      %v1301 = vunpack.c.l.b16 %v335
      %v1302 = vunpack.c.l.b16 %v336
      %v1303 = vunpack.c.l.b16 %v337
      %v1304 = vunpack.c.l.b16 %v338
      %v1305 = vunpack.c.l.b16 %v339
      %v1306 = vunpack.c.l.b16 %v340
      %v1307 = vunpack.c.l.b16 %v341
      %v1308 = vunpack.c.l.b16 %v342
      %v1309 = vunpack.c.l.b16 %v343
      %v1310 = vunpack.c.l.b16 %v344
      %v1311 = vunpack.c.l.b16 %v345
      %v1312 = vunpack.c.l.b16 %v346
      %v1313 = vunpack.c.l.b16 %v347
      %v1314 = vunpack.c.l.b16 %v348
      %v1315 = vunpack.c.l.b16 %v349
      %v1316 = vpack.c.b16 %v933, %v1300
      %v1317 = vpack.c.b16 %v935, %v1301
      %v1318 = vpack.c.b16 %v937, %v1302
      %v1319 = vpack.c.b16 %v939, %v1303
      %v1320 = vpack.c.b16 %v941, %v1304
      %v1321 = vpack.c.b16 %v943, %v1305
      %v1322 = vpack.c.b16 %v945, %v1306
      %v1323 = vpack.c.b16 %v947, %v1307
      %v1324 = vpack.c.b16 %v949, %v1308
      %v1325 = vpack.c.b16 %v951, %v1309
      %v1326 = vpack.c.b16 %v953, %v1310
      %v1327 = vpack.c.b16 %v955, %v1311
      %v1328 = vpack.c.b16 %v957, %v1312
      %v1329 = vpack.c.b16 %v959, %v1313
      %v1330 = vpack.c.b16 %v961, %v1314
      %v1331 = vpack.c.b16 %v963, %v1315
      %v1332 = vrot.slane %v1316, 1
      %v1333 = vrot.slane %v1044, 1
      %v1334 = vsel %vm819, %v1332, %v1333
      %v1335 = vrot.slane %v1317, 1
      %v1336 = vrot.slane %v1045, 1
      %v1337 = vsel %vm819, %v1335, %v1336
      %v1338 = vrot.slane %v1318, 1
      %v1339 = vrot.slane %v1046, 1
      %v1340 = vsel %vm819, %v1338, %v1339
      %v1341 = vrot.slane %v1319, 1
      %v1342 = vrot.slane %v1047, 1
      %v1343 = vsel %vm819, %v1341, %v1342
      %v1344 = vrot.slane %v1320, 1
      %v1345 = vrot.slane %v1048, 1
      %v1346 = vsel %vm819, %v1344, %v1345
      %v1347 = vrot.slane %v1321, 1
      %v1348 = vrot.slane %v1049, 1
      %v1349 = vsel %vm819, %v1347, %v1348
      %v1350 = vrot.slane %v1322, 1
      %v1351 = vrot.slane %v1050, 1
      %v1352 = vsel %vm819, %v1350, %v1351
      %v1353 = vrot.slane %v1323, 1
      %v1354 = vrot.slane %v1051, 1
      %v1355 = vsel %vm819, %v1353, %v1354
      %v1356 = vrot.slane %v1324, 1
      %v1357 = vrot.slane %v1052, 1
      %v1358 = vsel %vm819, %v1356, %v1357
      %v1359 = vrot.slane %v1325, 1
      %v1360 = vrot.slane %v1053, 1
      %v1361 = vsel %vm819, %v1359, %v1360
      %v1362 = vrot.slane %v1326, 1
      %v1363 = vrot.slane %v1054, 1
      %v1364 = vsel %vm819, %v1362, %v1363
      %v1365 = vrot.slane %v1327, 1
      %v1366 = vrot.slane %v1055, 1
      %v1367 = vsel %vm819, %v1365, %v1366
      %v1368 = vrot.slane %v1328, 1
      %v1369 = vrot.slane %v1056, 1
      %v1370 = vsel %vm819, %v1368, %v1369
      %v1371 = vrot.slane %v1329, 1
      %v1372 = vrot.slane %v1057, 1
      %v1373 = vsel %vm819, %v1371, %v1372
      %v1374 = vrot.slane %v1330, 1
      %v1375 = vrot.slane %v1058, 1
      %v1376 = vsel %vm819, %v1374, %v1375
      %v1377 = vrot.slane %v1331, 1
      %v1378 = vrot.slane %v1059, 1
      %v1379 = vsel %vm819, %v1377, %v1378
      %1380 = vrot.lane.b32.xlu0 %v1334, 20
      %v1381 = vpop.permute.xlu0 %1380
      %1382 = vrot.lane.b32.xlu0 %v1337, 20
      %v1383 = vpop.permute.xlu0 %1382
      %1384 = vrot.lane.b32.xlu0 %v1340, 20
      %v1385 = vpop.permute.xlu0 %1384
      %1386 = vrot.lane.b32.xlu0 %v1343, 20
      %v1387 = vpop.permute.xlu0 %1386
      %1388 = vrot.lane.b32.xlu0 %v1346, 20
      %v1389 = vpop.permute.xlu0 %1388
      %1390 = vrot.lane.b32.xlu0 %v1349, 20
      %v1391 = vpop.permute.xlu0 %1390
      %1392 = vrot.lane.b32.xlu0 %v1352, 20
      %v1393 = vpop.permute.xlu0 %1392
      %1394 = vrot.lane.b32.xlu0 %v1355, 20
      %v1395 = vpop.permute.xlu0 %1394
      %1396 = vrot.lane.b32.xlu0 %v1358, 20
      %v1397 = vpop.permute.xlu0 %1396
      %1398 = vrot.lane.b32.xlu0 %v1361, 20
      %v1399 = vpop.permute.xlu0 %1398
      %1400 = vrot.lane.b32.xlu0 %v1364, 20
      %v1401 = vpop.permute.xlu0 %1400
      %1402 = vrot.lane.b32.xlu0 %v1367, 20
      %v1403 = vpop.permute.xlu0 %1402
      %1404 = vrot.lane.b32.xlu0 %v1370, 20
      %v1405 = vpop.permute.xlu0 %1404
      %1406 = vrot.lane.b32.xlu0 %v1373, 20
      %v1407 = vpop.permute.xlu0 %1406
      %1408 = vrot.lane.b32.xlu0 %v1376, 20
      %v1409 = vpop.permute.xlu0 %1408
      %1410 = vrot.lane.b32.xlu0 %v1379, 20
      %v1411 = vpop.permute.xlu0 %1410
      %v1444 = vunpack.c.l.b16 %v354
      %v1445 = vunpack.c.l.b16 %v355
      %v1446 = vunpack.c.l.b16 %v356
      %v1447 = vunpack.c.l.b16 %v357
      %v1448 = vunpack.c.l.b16 %v358
      %v1449 = vunpack.c.l.b16 %v359
      %v1450 = vunpack.c.l.b16 %v360
      %v1451 = vunpack.c.l.b16 %v361
      %v1452 = vunpack.c.l.b16 %v362
      %v1453 = vunpack.c.l.b16 %v363
      %v1454 = vunpack.c.l.b16 %v364
      %v1455 = vunpack.c.l.b16 %v365
      %v1456 = vunpack.c.l.b16 %v366
      %v1457 = vunpack.c.l.b16 %v367
      %v1458 = vunpack.c.l.b16 %v368
      %v1459 = vunpack.c.l.b16 %v369
      %v1460 = vunpack.c.l.b16 %v370
      %v1461 = vunpack.c.l.b16 %v371
      %v1462 = vunpack.c.l.b16 %v372
      %v1463 = vunpack.c.l.b16 %v373
      %v1464 = vunpack.c.l.b16 %v374
      %v1465 = vunpack.c.l.b16 %v375
      %v1466 = vunpack.c.l.b16 %v376
      %v1467 = vunpack.c.l.b16 %v377
      %v1468 = vunpack.c.l.b16 %v378
      %v1469 = vunpack.c.l.b16 %v379
      %v1470 = vunpack.c.l.b16 %v380
      %v1471 = vunpack.c.l.b16 %v381
      %v1472 = vunpack.c.l.b16 %v382
      %v1473 = vunpack.c.l.b16 %v383
      %v1474 = vunpack.c.l.b16 %v384
      %v1475 = vunpack.c.l.b16 %v385
      %v1476 = vpack.c.b16 %v1445, %v1444
      %v1477 = vpack.c.b16 %v1447, %v1446
      %v1478 = vpack.c.b16 %v1449, %v1448
      %v1479 = vpack.c.b16 %v1451, %v1450
      %v1480 = vpack.c.b16 %v1453, %v1452
      %v1481 = vpack.c.b16 %v1455, %v1454
      %v1482 = vpack.c.b16 %v1457, %v1456
      %v1483 = vpack.c.b16 %v1459, %v1458
      %v1484 = vpack.c.b16 %v1461, %v1460
      %v1485 = vpack.c.b16 %v1463, %v1462
      %v1486 = vpack.c.b16 %v1465, %v1464
      %v1487 = vpack.c.b16 %v1467, %v1466
      %v1488 = vpack.c.b16 %v1469, %v1468
      %v1489 = vpack.c.b16 %v1471, %v1470
      %v1490 = vpack.c.b16 %v1473, %v1472
      %v1491 = vpack.c.b16 %v1475, %v1474
      %1492 = vrot.lane.b32.xlu0 %v1476, 24
      %v1493 = vpop.permute.xlu0 %1492
      %1494 = vrot.lane.b32.xlu0 %v1477, 24
      %v1495 = vpop.permute.xlu0 %1494
      %1496 = vrot.lane.b32.xlu0 %v1478, 24
      %v1497 = vpop.permute.xlu0 %1496
      %1498 = vrot.lane.b32.xlu0 %v1479, 24
      %v1499 = vpop.permute.xlu0 %1498
      %1500 = vrot.lane.b32.xlu0 %v1480, 24
      %v1501 = vpop.permute.xlu0 %1500
      %1502 = vrot.lane.b32.xlu0 %v1481, 24
      %v1503 = vpop.permute.xlu0 %1502
      %1504 = vrot.lane.b32.xlu0 %v1482, 24
      %v1505 = vpop.permute.xlu0 %1504
      %1506 = vrot.lane.b32.xlu0 %v1483, 24
      %v1507 = vpop.permute.xlu0 %1506
      %1508 = vrot.lane.b32.xlu0 %v1484, 24
      %v1509 = vpop.permute.xlu0 %1508
      %1510 = vrot.lane.b32.xlu0 %v1485, 24
      %v1511 = vpop.permute.xlu0 %1510
      %1512 = vrot.lane.b32.xlu0 %v1486, 24
      %v1513 = vpop.permute.xlu0 %1512
      %1514 = vrot.lane.b32.xlu0 %v1487, 24
      %v1515 = vpop.permute.xlu0 %1514
      %1516 = vrot.lane.b32.xlu0 %v1488, 24
      %v1517 = vpop.permute.xlu0 %1516
      %1518 = vrot.lane.b32.xlu0 %v1489, 24
      %v1519 = vpop.permute.xlu0 %1518
      %1520 = vrot.lane.b32.xlu0 %v1490, 24
      %v1521 = vpop.permute.xlu0 %1520
      %1522 = vrot.lane.b32.xlu0 %v1491, 24
      %v1523 = vpop.permute.xlu0 %1522
      %v1540 = vunpack.c.l.b16 %v386
      %v1541 = vunpack.c.l.b16 %v387
      %v1542 = vunpack.c.l.b16 %v388
      %v1543 = vunpack.c.l.b16 %v389
      %v1544 = vunpack.c.l.b16 %v390
      %v1545 = vunpack.c.l.b16 %v391
      %v1546 = vunpack.c.l.b16 %v392
      %v1547 = vunpack.c.l.b16 %v393
      %v1548 = vunpack.c.l.b16 %v394
      %v1549 = vunpack.c.l.b16 %v395
      %v1550 = vunpack.c.l.b16 %v396
      %v1551 = vunpack.c.l.b16 %v397
      %v1552 = vunpack.c.l.b16 %v398
      %v1553 = vunpack.c.l.b16 %v399
      %v1554 = vunpack.c.l.b16 %v400
      %v1555 = vunpack.c.l.b16 %v401
      %v1556 = vpack.c.b16 %v1540, %v1540
      %v1557 = vpack.c.b16 %v1541, %v1541
      %v1558 = vpack.c.b16 %v1542, %v1542
      %v1559 = vpack.c.b16 %v1543, %v1543
      %v1560 = vpack.c.b16 %v1544, %v1544
      %v1561 = vpack.c.b16 %v1545, %v1545
      %v1562 = vpack.c.b16 %v1546, %v1546
      %v1563 = vpack.c.b16 %v1547, %v1547
      %v1564 = vpack.c.b16 %v1548, %v1548
      %v1565 = vpack.c.b16 %v1549, %v1549
      %v1566 = vpack.c.b16 %v1550, %v1550
      %v1567 = vpack.c.b16 %v1551, %v1551
      %v1568 = vpack.c.b16 %v1552, %v1552
      %v1569 = vpack.c.b16 %v1553, %v1553
      %v1570 = vpack.c.b16 %v1554, %v1554
      %v1571 = vpack.c.b16 %v1555, %v1555
      %v1573 = vshrl.u32 %v1476, 16
      %v1575 = vshll.u32 %v1476, 16
      %v1577 = vrot.slane %v1575, 1
      %v1578 = vor.u32 %v1573, %v1577
      %v1580 = vshll.u32 %v1556, 16
      %v1582 = vrot.slane %v1580, 1
      %v1583 = vsel %vm546, %v1578, %v1582
      %v1585 = vshrl.u32 %v1477, 16
      %v1587 = vshll.u32 %v1477, 16
      %v1589 = vrot.slane %v1587, 1
      %v1590 = vor.u32 %v1585, %v1589
      %v1592 = vshll.u32 %v1557, 16
      %v1594 = vrot.slane %v1592, 1
      %v1595 = vsel %vm546, %v1590, %v1594
      %v1597 = vshrl.u32 %v1478, 16
      %v1599 = vshll.u32 %v1478, 16
      %v1601 = vrot.slane %v1599, 1
      %v1602 = vor.u32 %v1597, %v1601
      %v1604 = vshll.u32 %v1558, 16
      %v1606 = vrot.slane %v1604, 1
      %v1607 = vsel %vm546, %v1602, %v1606
      %v1609 = vshrl.u32 %v1479, 16
      %v1611 = vshll.u32 %v1479, 16
      %v1613 = vrot.slane %v1611, 1
      %v1614 = vor.u32 %v1609, %v1613
      %v1616 = vshll.u32 %v1559, 16
      %v1618 = vrot.slane %v1616, 1
      %v1619 = vsel %vm546, %v1614, %v1618
      %v1621 = vshrl.u32 %v1480, 16
      %v1623 = vshll.u32 %v1480, 16
      %v1625 = vrot.slane %v1623, 1
      %v1626 = vor.u32 %v1621, %v1625
      %v1628 = vshll.u32 %v1560, 16
      %v1630 = vrot.slane %v1628, 1
      %v1631 = vsel %vm546, %v1626, %v1630
      %v1633 = vshrl.u32 %v1481, 16
      %v1635 = vshll.u32 %v1481, 16
      %v1637 = vrot.slane %v1635, 1
      %v1638 = vor.u32 %v1633, %v1637
      %v1640 = vshll.u32 %v1561, 16
      %v1642 = vrot.slane %v1640, 1
      %v1643 = vsel %vm546, %v1638, %v1642
      %v1645 = vshrl.u32 %v1482, 16
      %v1647 = vshll.u32 %v1482, 16
      %v1649 = vrot.slane %v1647, 1
      %v1650 = vor.u32 %v1645, %v1649
      %v1652 = vshll.u32 %v1562, 16
      %v1654 = vrot.slane %v1652, 1
      %v1655 = vsel %vm546, %v1650, %v1654
      %v1657 = vshrl.u32 %v1483, 16
      %v1659 = vshll.u32 %v1483, 16
      %v1661 = vrot.slane %v1659, 1
      %v1662 = vor.u32 %v1657, %v1661
      %v1664 = vshll.u32 %v1563, 16
      %v1666 = vrot.slane %v1664, 1
      %v1667 = vsel %vm546, %v1662, %v1666
      %v1669 = vshrl.u32 %v1484, 16
      %v1671 = vshll.u32 %v1484, 16
      %v1673 = vrot.slane %v1671, 1
      %v1674 = vor.u32 %v1669, %v1673
      %v1676 = vshll.u32 %v1564, 16
      %v1678 = vrot.slane %v1676, 1
      %v1679 = vsel %vm546, %v1674, %v1678
      %v1681 = vshrl.u32 %v1485, 16
      %v1683 = vshll.u32 %v1485, 16
      %v1685 = vrot.slane %v1683, 1
      %v1686 = vor.u32 %v1681, %v1685
      %v1688 = vshll.u32 %v1565, 16
      %v1690 = vrot.slane %v1688, 1
      %v1691 = vsel %vm546, %v1686, %v1690
      %v1693 = vshrl.u32 %v1486, 16
      %v1695 = vshll.u32 %v1486, 16
      %v1697 = vrot.slane %v1695, 1
      %v1698 = vor.u32 %v1693, %v1697
      %v1700 = vshll.u32 %v1566, 16
      %v1702 = vrot.slane %v1700, 1
      %v1703 = vsel %vm546, %v1698, %v1702
      %v1705 = vshrl.u32 %v1487, 16
      %v1707 = vshll.u32 %v1487, 16
      %v1709 = vrot.slane %v1707, 1
      %v1710 = vor.u32 %v1705, %v1709
      %v1712 = vshll.u32 %v1567, 16
      %v1714 = vrot.slane %v1712, 1
      %v1715 = vsel %vm546, %v1710, %v1714
      %v1717 = vshrl.u32 %v1488, 16
      %v1719 = vshll.u32 %v1488, 16
      %v1721 = vrot.slane %v1719, 1
      %v1722 = vor.u32 %v1717, %v1721
      %v1724 = vshll.u32 %v1568, 16
      %v1726 = vrot.slane %v1724, 1
      %v1727 = vsel %vm546, %v1722, %v1726
      %v1729 = vshrl.u32 %v1489, 16
      %v1731 = vshll.u32 %v1489, 16
      %v1733 = vrot.slane %v1731, 1
      %v1734 = vor.u32 %v1729, %v1733
      %v1736 = vshll.u32 %v1569, 16
      %v1738 = vrot.slane %v1736, 1
      %v1739 = vsel %vm546, %v1734, %v1738
      %v1741 = vshrl.u32 %v1490, 16
      %v1743 = vshll.u32 %v1490, 16
      %v1745 = vrot.slane %v1743, 1
      %v1746 = vor.u32 %v1741, %v1745
      %v1748 = vshll.u32 %v1570, 16
      %v1750 = vrot.slane %v1748, 1
      %v1751 = vsel %vm546, %v1746, %v1750
      %v1753 = vshrl.u32 %v1491, 16
      %v1755 = vshll.u32 %v1491, 16
      %v1757 = vrot.slane %v1755, 1
      %v1758 = vor.u32 %v1753, %v1757
      %v1760 = vshll.u32 %v1571, 16
      %v1762 = vrot.slane %v1760, 1
      %v1763 = vsel %vm546, %v1758, %v1762
      %1764 = vrot.lane.b32.xlu0 %v1583, 28
      %v1765 = vpop.permute.xlu0 %1764
      %1766 = vrot.lane.b32.xlu0 %v1595, 28
      %v1767 = vpop.permute.xlu0 %1766
      %1768 = vrot.lane.b32.xlu0 %v1607, 28
      %v1769 = vpop.permute.xlu0 %1768
      %1770 = vrot.lane.b32.xlu0 %v1619, 28
      %v1771 = vpop.permute.xlu0 %1770
      %1772 = vrot.lane.b32.xlu0 %v1631, 28
      %v1773 = vpop.permute.xlu0 %1772
      %1774 = vrot.lane.b32.xlu0 %v1643, 28
      %v1775 = vpop.permute.xlu0 %1774
      %1776 = vrot.lane.b32.xlu0 %v1655, 28
      %v1777 = vpop.permute.xlu0 %1776
      %1778 = vrot.lane.b32.xlu0 %v1667, 28
      %v1779 = vpop.permute.xlu0 %1778
      %1780 = vrot.lane.b32.xlu0 %v1679, 28
      %v1781 = vpop.permute.xlu0 %1780
      %1782 = vrot.lane.b32.xlu0 %v1691, 28
      %v1783 = vpop.permute.xlu0 %1782
      %1784 = vrot.lane.b32.xlu0 %v1703, 28
      %v1785 = vpop.permute.xlu0 %1784
      %1786 = vrot.lane.b32.xlu0 %v1715, 28
      %v1787 = vpop.permute.xlu0 %1786
      %1788 = vrot.lane.b32.xlu0 %v1727, 28
      %v1789 = vpop.permute.xlu0 %1788
      %1790 = vrot.lane.b32.xlu0 %v1739, 28
      %v1791 = vpop.permute.xlu0 %1790
      %1792 = vrot.lane.b32.xlu0 %v1751, 28
      %v1793 = vpop.permute.xlu0 %1792
      %1794 = vrot.lane.b32.xlu0 %v1763, 28
      %v1795 = vpop.permute.xlu0 %1794
      %v1812 = vunpack.c.l.b16 %v402
      %v1813 = vunpack.c.l.b16 %v403
      %v1814 = vunpack.c.l.b16 %v404
      %v1815 = vunpack.c.l.b16 %v405
      %v1816 = vunpack.c.l.b16 %v406
      %v1817 = vunpack.c.l.b16 %v407
      %v1818 = vunpack.c.l.b16 %v408
      %v1819 = vunpack.c.l.b16 %v409
      %v1820 = vunpack.c.l.b16 %v410
      %v1821 = vunpack.c.l.b16 %v411
      %v1822 = vunpack.c.l.b16 %v412
      %v1823 = vunpack.c.l.b16 %v413
      %v1824 = vunpack.c.l.b16 %v414
      %v1825 = vunpack.c.l.b16 %v415
      %v1826 = vunpack.c.l.b16 %v416
      %v1827 = vunpack.c.l.b16 %v417
      %v1828 = vpack.c.b16 %v1445, %v1812
      %v1829 = vpack.c.b16 %v1447, %v1813
      %v1830 = vpack.c.b16 %v1449, %v1814
      %v1831 = vpack.c.b16 %v1451, %v1815
      %v1832 = vpack.c.b16 %v1453, %v1816
      %v1833 = vpack.c.b16 %v1455, %v1817
      %v1834 = vpack.c.b16 %v1457, %v1818
      %v1835 = vpack.c.b16 %v1459, %v1819
      %v1836 = vpack.c.b16 %v1461, %v1820
      %v1837 = vpack.c.b16 %v1463, %v1821
      %v1838 = vpack.c.b16 %v1465, %v1822
      %v1839 = vpack.c.b16 %v1467, %v1823
      %v1840 = vpack.c.b16 %v1469, %v1824
      %v1841 = vpack.c.b16 %v1471, %v1825
      %v1842 = vpack.c.b16 %v1473, %v1826
      %v1843 = vpack.c.b16 %v1475, %v1827
      %v1844 = vrot.slane %v1828, 1
      %v1845 = vrot.slane %v1556, 1
      %v1846 = vsel %vm819, %v1844, %v1845
      %v1847 = vrot.slane %v1829, 1
      %v1848 = vrot.slane %v1557, 1
      %v1849 = vsel %vm819, %v1847, %v1848
      %v1850 = vrot.slane %v1830, 1
      %v1851 = vrot.slane %v1558, 1
      %v1852 = vsel %vm819, %v1850, %v1851
      %v1853 = vrot.slane %v1831, 1
      %v1854 = vrot.slane %v1559, 1
      %v1855 = vsel %vm819, %v1853, %v1854
      %v1856 = vrot.slane %v1832, 1
      %v1857 = vrot.slane %v1560, 1
      %v1858 = vsel %vm819, %v1856, %v1857
      %v1859 = vrot.slane %v1833, 1
      %v1860 = vrot.slane %v1561, 1
      %v1861 = vsel %vm819, %v1859, %v1860
      %v1862 = vrot.slane %v1834, 1
      %v1863 = vrot.slane %v1562, 1
      %v1864 = vsel %vm819, %v1862, %v1863
      %v1865 = vrot.slane %v1835, 1
      %v1866 = vrot.slane %v1563, 1
      %v1867 = vsel %vm819, %v1865, %v1866
      %v1868 = vrot.slane %v1836, 1
      %v1869 = vrot.slane %v1564, 1
      %v1870 = vsel %vm819, %v1868, %v1869
      %v1871 = vrot.slane %v1837, 1
      %v1872 = vrot.slane %v1565, 1
      %v1873 = vsel %vm819, %v1871, %v1872
      %v1874 = vrot.slane %v1838, 1
      %v1875 = vrot.slane %v1566, 1
      %v1876 = vsel %vm819, %v1874, %v1875
      %v1877 = vrot.slane %v1839, 1
      %v1878 = vrot.slane %v1567, 1
      %v1879 = vsel %vm819, %v1877, %v1878
      %v1880 = vrot.slane %v1840, 1
      %v1881 = vrot.slane %v1568, 1
      %v1882 = vsel %vm819, %v1880, %v1881
      %v1883 = vrot.slane %v1841, 1
      %v1884 = vrot.slane %v1569, 1
      %v1885 = vsel %vm819, %v1883, %v1884
      %v1886 = vrot.slane %v1842, 1
      %v1887 = vrot.slane %v1570, 1
      %v1888 = vsel %vm819, %v1886, %v1887
      %v1889 = vrot.slane %v1843, 1
      %v1890 = vrot.slane %v1571, 1
      %v1891 = vsel %vm819, %v1889, %v1890
      %1892 = vrot.lane.b32.xlu0 %v1846, 32
      %v1893 = vpop.permute.xlu0 %1892
      %1894 = vrot.lane.b32.xlu0 %v1849, 32
      %v1895 = vpop.permute.xlu0 %1894
      %1896 = vrot.lane.b32.xlu0 %v1852, 32
      %v1897 = vpop.permute.xlu0 %1896
      %1898 = vrot.lane.b32.xlu0 %v1855, 32
      %v1899 = vpop.permute.xlu0 %1898
      %1900 = vrot.lane.b32.xlu0 %v1858, 32
      %v1901 = vpop.permute.xlu0 %1900
      %1902 = vrot.lane.b32.xlu0 %v1861, 32
      %v1903 = vpop.permute.xlu0 %1902
      %1904 = vrot.lane.b32.xlu0 %v1864, 32
      %v1905 = vpop.permute.xlu0 %1904
      %1906 = vrot.lane.b32.xlu0 %v1867, 32
      %v1907 = vpop.permute.xlu0 %1906
      %1908 = vrot.lane.b32.xlu0 %v1870, 32
      %v1909 = vpop.permute.xlu0 %1908
      %1910 = vrot.lane.b32.xlu0 %v1873, 32
      %v1911 = vpop.permute.xlu0 %1910
      %1912 = vrot.lane.b32.xlu0 %v1876, 32
      %v1913 = vpop.permute.xlu0 %1912
      %1914 = vrot.lane.b32.xlu0 %v1879, 32
      %v1915 = vpop.permute.xlu0 %1914
      %1916 = vrot.lane.b32.xlu0 %v1882, 32
      %v1917 = vpop.permute.xlu0 %1916
      %1918 = vrot.lane.b32.xlu0 %v1885, 32
      %v1919 = vpop.permute.xlu0 %1918
      %1920 = vrot.lane.b32.xlu0 %v1888, 32
      %v1921 = vpop.permute.xlu0 %1920
      %1922 = vrot.lane.b32.xlu0 %v1891, 32
      %v1923 = vpop.permute.xlu0 %1922
      %vm1924 = vcmask 31744
      %v1926 = vsel %vm1924, %v482, %v740
      %v1928 = vsel %vm1924, %v483, %v742
      %v1930 = vsel %vm1924, %v484, %v744
      %v1932 = vsel %vm1924, %v485, %v746
      %v1934 = vsel %vm1924, %v486, %v748
      %v1936 = vsel %vm1924, %v487, %v750
      %v1938 = vsel %vm1924, %v488, %v752
      %v1940 = vsel %vm1924, %v489, %v754
      %v1942 = vsel %vm1924, %v490, %v756
      %v1944 = vsel %vm1924, %v491, %v758
      %v1946 = vsel %vm1924, %v492, %v760
      %v1948 = vsel %vm1924, %v493, %v762
      %v1950 = vsel %vm1924, %v494, %v764
      %v1952 = vsel %vm1924, %v495, %v766
      %v1954 = vsel %vm1924, %v496, %v768
      %v1956 = vsel %vm1924, %v497, %v770
      %vm1957 = vcmask 64512
      %v1959 = vsel %vm1957, %v1926, %v869
      %v1961 = vsel %vm1957, %v1928, %v871
      %v1963 = vsel %vm1957, %v1930, %v873
      %v1965 = vsel %vm1957, %v1932, %v875
      %v1967 = vsel %vm1957, %v1934, %v877
      %v1969 = vsel %vm1957, %v1936, %v879
      %v1971 = vsel %vm1957, %v1938, %v881
      %v1973 = vsel %vm1957, %v1940, %v883
      %v1975 = vsel %vm1957, %v1942, %v885
      %v1977 = vsel %vm1957, %v1944, %v887
      %v1979 = vsel %vm1957, %v1946, %v889
      %v1981 = vsel %vm1957, %v1948, %v891
      %v1983 = vsel %vm1957, %v1950, %v893
      %v1985 = vsel %vm1957, %v1952, %v895
      %v1987 = vsel %vm1957, %v1954, %v897
      %v1989 = vsel %vm1957, %v1956, %v899
      %vm1990 = vcmask 97280
      %v1992 = vsel %vm1990, %v1959, %v981
      %v1994 = vsel %vm1990, %v1961, %v983
      %v1996 = vsel %vm1990, %v1963, %v985
      %v1998 = vsel %vm1990, %v1965, %v987
      %v2000 = vsel %vm1990, %v1967, %v989
      %v2002 = vsel %vm1990, %v1969, %v991
      %v2004 = vsel %vm1990, %v1971, %v993
      %v2006 = vsel %vm1990, %v1973, %v995
      %v2008 = vsel %vm1990, %v1975, %v997
      %v2010 = vsel %vm1990, %v1977, %v999
      %v2012 = vsel %vm1990, %v1979, %v1001
      %v2014 = vsel %vm1990, %v1981, %v1003
      %v2016 = vsel %vm1990, %v1983, %v1005
      %v2018 = vsel %vm1990, %v1985, %v1007
      %v2020 = vsel %vm1990, %v1987, %v1009
      %v2022 = vsel %vm1990, %v1989, %v1011
      %vm2023 = vcmask 130048
      %v2025 = vsel %vm2023, %v1992, %v1253
      %v2027 = vsel %vm2023, %v1994, %v1255
      %v2029 = vsel %vm2023, %v1996, %v1257
      %v2031 = vsel %vm2023, %v1998, %v1259
      %v2033 = vsel %vm2023, %v2000, %v1261
      %v2035 = vsel %vm2023, %v2002, %v1263
      %v2037 = vsel %vm2023, %v2004, %v1265
      %v2039 = vsel %vm2023, %v2006, %v1267
      %v2041 = vsel %vm2023, %v2008, %v1269
      %v2043 = vsel %vm2023, %v2010, %v1271
      %v2045 = vsel %vm2023, %v2012, %v1273
      %v2047 = vsel %vm2023, %v2014, %v1275
      %v2049 = vsel %vm2023, %v2016, %v1277
      %v2051 = vsel %vm2023, %v2018, %v1279
      %v2053 = vsel %vm2023, %v2020, %v1281
      %v2055 = vsel %vm2023, %v2022, %v1283
      %vm2056 = vcmask 162816
      %v2058 = vsel %vm2056, %v2025, %v1381
      %v2060 = vsel %vm2056, %v2027, %v1383
      %v2062 = vsel %vm2056, %v2029, %v1385
      %v2064 = vsel %vm2056, %v2031, %v1387
      %v2066 = vsel %vm2056, %v2033, %v1389
      %v2068 = vsel %vm2056, %v2035, %v1391
      %v2070 = vsel %vm2056, %v2037, %v1393
      %v2072 = vsel %vm2056, %v2039, %v1395
      %v2074 = vsel %vm2056, %v2041, %v1397
      %v2076 = vsel %vm2056, %v2043, %v1399
      %v2078 = vsel %vm2056, %v2045, %v1401
      %v2080 = vsel %vm2056, %v2047, %v1403
      %v2082 = vsel %vm2056, %v2049, %v1405
      %v2084 = vsel %vm2056, %v2051, %v1407
      %v2086 = vsel %vm2056, %v2053, %v1409
      %v2088 = vsel %vm2056, %v2055, %v1411
      %vm2089 = vcmask 195584
      %v2091 = vsel %vm2089, %v2058, %v1493
      %v2093 = vsel %vm2089, %v2060, %v1495
      %v2095 = vsel %vm2089, %v2062, %v1497
      %v2097 = vsel %vm2089, %v2064, %v1499
      %v2099 = vsel %vm2089, %v2066, %v1501
      %v2101 = vsel %vm2089, %v2068, %v1503
      %v2103 = vsel %vm2089, %v2070, %v1505
      %v2105 = vsel %vm2089, %v2072, %v1507
      %v2107 = vsel %vm2089, %v2074, %v1509
      %v2109 = vsel %vm2089, %v2076, %v1511
      %v2111 = vsel %vm2089, %v2078, %v1513
      %v2113 = vsel %vm2089, %v2080, %v1515
      %v2115 = vsel %vm2089, %v2082, %v1517
      %v2117 = vsel %vm2089, %v2084, %v1519
      %v2119 = vsel %vm2089, %v2086, %v1521
      %v2121 = vsel %vm2089, %v2088, %v1523
      %vm2122 = vcmask 228352
      %v2124 = vsel %vm2122, %v2091, %v1765
      %v2126 = vsel %vm2122, %v2093, %v1767
      %v2128 = vsel %vm2122, %v2095, %v1769
      %v2130 = vsel %vm2122, %v2097, %v1771
      %v2132 = vsel %vm2122, %v2099, %v1773
      %v2134 = vsel %vm2122, %v2101, %v1775
      %v2136 = vsel %vm2122, %v2103, %v1777
      %v2138 = vsel %vm2122, %v2105, %v1779
      %v2140 = vsel %vm2122, %v2107, %v1781
      %v2142 = vsel %vm2122, %v2109, %v1783
      %v2144 = vsel %vm2122, %v2111, %v1785
      %v2146 = vsel %vm2122, %v2113, %v1787
      %v2148 = vsel %vm2122, %v2115, %v1789
      %v2150 = vsel %vm2122, %v2117, %v1791
      %v2152 = vsel %vm2122, %v2119, %v1793
      %v2154 = vsel %vm2122, %v2121, %v1795
      %vm2155 = vcmask 261120
      %v2157 = vsel %vm2155, %v2124, %v1893
      %v2159 = vsel %vm2155, %v2126, %v1895
      %v2161 = vsel %vm2155, %v2128, %v1897
      %v2163 = vsel %vm2155, %v2130, %v1899
      %v2165 = vsel %vm2155, %v2132, %v1901
      %v2167 = vsel %vm2155, %v2134, %v1903
      %v2169 = vsel %vm2155, %v2136, %v1905
      %v2171 = vsel %vm2155, %v2138, %v1907
      %v2173 = vsel %vm2155, %v2140, %v1909
      %v2175 = vsel %vm2155, %v2142, %v1911
      %v2177 = vsel %vm2155, %v2144, %v1913
      %v2179 = vsel %vm2155, %v2146, %v1915
      %v2181 = vsel %vm2155, %v2148, %v1917
      %v2183 = vsel %vm2155, %v2150, %v1919
      %v2185 = vsel %vm2155, %v2152, %v1921
      %v2187 = vsel %vm2155, %v2154, %v1923
      %v2188 = vld [vmem:[%s1] sm:$0xf]
      %v2189 = vld [vmem:[%s1 + $0x4] sm:$0xf]
      %v2190 = vld [vmem:[%s1 + $0x8] sm:$0xf]
      %v2191 = vld [vmem:[%s1 + $0xc] sm:$0xf]
      %v2192 = vld [vmem:[%s1 + $0x10] sm:$0x3]
      %v2198 = vunpack.c.l.b16 %v2188
      %v2199 = vunpack.c.l.b16 %v2189
      %v2200 = vunpack.c.l.b16 %v2190
      %v2201 = vunpack.c.l.b16 %v2191
      %v2202 = vunpack.c.l.b16 %v2192
      %v2203 = vpack.c.b16 %v2199, %v2198
      %v2204 = vpack.c.b16 %v2201, %v2200
      %v2205 = vpack.c.b16 %v2202, %v2202
      %vm2208 = vcmask 293888
      %v2209 = vsel %vm2208, %v2157, 0
      %v2211 = vsel %vm2208, %v2159, 0
      %v2213 = vsel %vm2208, %v2161, 0
      %v2215 = vsel %vm2208, %v2163, 0
      %v2217 = vsel %vm2208, %v2165, 0
      %v2219 = vsel %vm2208, %v2167, 0
      %v2221 = vsel %vm2208, %v2169, 0
      %v2223 = vsel %vm2208, %v2171, 0
      %v2225 = vsel %vm2208, %v2173, 0
      %v2227 = vsel %vm2208, %v2175, 0
      %v2229 = vsel %vm2208, %v2177, 0
      %v2231 = vsel %vm2208, %v2179, 0
      %v2233 = vsel %vm2208, %v2181, 0
      %v2235 = vsel %vm2208, %v2183, 0
      %v2237 = vsel %vm2208, %v2185, 0
      %v2239 = vsel %vm2208, %v2187, 0
      %vm2241 = vcmask 1041408
      %v2243 = vsel %vm2241, %v2205, 0
      %2245 = vmatprep.subr.bf16.mxu0 0
      %2246 = vmatpush1.bf16.msra.mxu0 %v2203
      %2247 = vmatprep.subr.bf16.mxu0 0
      %2248 = vmatpush1.bf16.msra.mxu0 %v2204
      %2249 = vmatprep.subr.bf16.mxu0 0
      %2250 = vmatpush1.bf16.msra.mxu0 %v2243
      %2251 = vmatprep.subr.bf16.mxu0 0
      %2252 = vmatpush1.bf16.msra.mxu0 0
      %2253 = vmatprep.subr.bf16.mxu0 0
      %2254 = vmatpush1.bf16.msra.mxu0 0
      %2255 = vmatprep.subr.bf16.mxu0 0
      %2256 = vmatpush1.bf16.msra.mxu0 0
      %2257 = vmatprep.subr.bf16.mxu0 0
      %2258 = vmatpush1.bf16.msra.mxu0 0
      %2259 = vmatprep.subr.bf16.mxu0 0
      %2260 = vmatpush1.bf16.msra.mxu0 0
      %2261 = vmatprep.subr.bf16.mxu0 0
      %2262 = vmatpush1.bf16.msra.mxu0 0
      %2263 = vmatprep.subr.bf16.mxu0 0
      %2264 = vmatpush1.bf16.msra.mxu0 0
      %2265 = vmatprep.subr.bf16.mxu0 0
      %2266 = vmatpush1.bf16.msra.mxu0 0
      %2267 = vmatprep.subr.bf16.mxu0 0
      %2268 = vmatpush1.bf16.msra.mxu0 0
      %2269 = vmatprep.subr.bf16.mxu0 0
      %2270 = vmatpush1.bf16.msra.mxu0 0
      %2271 = vmatprep.subr.bf16.mxu0 0
      %2272 = vmatpush1.bf16.msra.mxu0 0
      %2273 = vmatprep.subr.bf16.mxu0 0
      %2274 = vmatpush1.bf16.msra.mxu0 0
      %2275 = vmatprep.subr.bf16.mxu0 0
      %2276 = vmatpush1.bf16.msra.mxu0 0
      %2277 = vmatprep.mubr.bf16.mxu0 0
      %2278 = vmatmul.mubr.bf16.gmra.mrb[0].mxu0 %v2209
      %v2279 = vpop.f32.mrb[0].mxu0
      %v2280 = vadd.f32 0.0, %v2279
      %v2281 = vpop.f32.mrb[0].mxu0
      %v2282 = vpop.f32.mrb[0].mxu0
      %v2283 = vadd.f32 0.0, %v2282
      %v2284 = vpop.f32.mrb[0].mxu0
      %2285 = vmatprep.mubr.bf16.mxu0 0
      %2286 = vmatmul.mubr.bf16.gmra.mrb[0].mxu0 %v2211
      %v2287 = vpop.f32.mrb[0].mxu0
      %v2288 = vadd.f32 0.0, %v2287
      %v2289 = vpop.f32.mrb[0].mxu0
      %v2290 = vpop.f32.mrb[0].mxu0
      %v2291 = vadd.f32 0.0, %v2290
      %v2292 = vpop.f32.mrb[0].mxu0
      %2293 = vmatprep.mubr.bf16.mxu0 0
      %2294 = vmatmul.mubr.bf16.gmra.mrb[0].mxu0 %v2213
      %v2295 = vpop.f32.mrb[0].mxu0
      %v2296 = vadd.f32 0.0, %v2295
      %v2297 = vpop.f32.mrb[0].mxu0
      %v2298 = vpop.f32.mrb[0].mxu0
      %v2299 = vadd.f32 0.0, %v2298
      %v2300 = vpop.f32.mrb[0].mxu0
      %2301 = vmatprep.mubr.bf16.mxu0 0
      %2302 = vmatmul.mubr.bf16.gmra.mrb[0].mxu0 %v2215
      %v2303 = vpop.f32.mrb[0].mxu0
      %v2304 = vadd.f32 0.0, %v2303
      %v2305 = vpop.f32.mrb[0].mxu0
      %v2306 = vpop.f32.mrb[0].mxu0
      %v2307 = vadd.f32 0.0, %v2306
      %v2308 = vpop.f32.mrb[0].mxu0
      %2309 = vmatprep.mubr.bf16.mxu0 0
      %2310 = vmatmul.mubr.bf16.gmra.mrb[0].mxu0 %v2217
      %v2311 = vpop.f32.mrb[0].mxu0
      %v2312 = vadd.f32 0.0, %v2311
      %v2313 = vpop.f32.mrb[0].mxu0
      %v2314 = vpop.f32.mrb[0].mxu0
      %v2315 = vadd.f32 0.0, %v2314
      %v2316 = vpop.f32.mrb[0].mxu0
      %2317 = vmatprep.mubr.bf16.mxu0 0
      %2318 = vmatmul.mubr.bf16.gmra.mrb[0].mxu0 %v2219
      %v2319 = vpop.f32.mrb[0].mxu0
      %v2320 = vadd.f32 0.0, %v2319
      %v2321 = vpop.f32.mrb[0].mxu0
      %v2322 = vpop.f32.mrb[0].mxu0
      %v2323 = vadd.f32 0.0, %v2322
      %v2324 = vpop.f32.mrb[0].mxu0
      %2325 = vmatprep.mubr.bf16.mxu0 0
      %2326 = vmatmul.mubr.bf16.gmra.mrb[0].mxu0 %v2221
      %v2327 = vpop.f32.mrb[0].mxu0
      %v2328 = vadd.f32 0.0, %v2327
      %v2329 = vpop.f32.mrb[0].mxu0
      %v2330 = vpop.f32.mrb[0].mxu0
      %v2331 = vadd.f32 0.0, %v2330
      %v2332 = vpop.f32.mrb[0].mxu0
      %2333 = vmatprep.mubr.bf16.mxu0 0
      %2334 = vmatmul.mubr.bf16.gmra.mrb[0].mxu0 %v2223
      %v2335 = vpop.f32.mrb[0].mxu0
      %v2336 = vadd.f32 0.0, %v2335
      %v2337 = vpop.f32.mrb[0].mxu0
      %v2338 = vpop.f32.mrb[0].mxu0
      %v2339 = vadd.f32 0.0, %v2338
      %v2340 = vpop.f32.mrb[0].mxu0
      %2341 = vmatprep.mubr.bf16.mxu0 0
      %2342 = vmatmul.mubr.bf16.gmra.mrb[0].mxu0 %v2225
      %v2343 = vpop.f32.mrb[0].mxu0
      %v2344 = vadd.f32 0.0, %v2343
      %v2345 = vpop.f32.mrb[0].mxu0
      %v2346 = vpop.f32.mrb[0].mxu0
      %v2347 = vadd.f32 0.0, %v2346
      %v2348 = vpop.f32.mrb[0].mxu0
      %2349 = vmatprep.mubr.bf16.mxu0 0
      %2350 = vmatmul.mubr.bf16.gmra.mrb[0].mxu0 %v2227
      %v2351 = vpop.f32.mrb[0].mxu0
      %v2352 = vadd.f32 0.0, %v2351
      %v2353 = vpop.f32.mrb[0].mxu0
      %v2354 = vpop.f32.mrb[0].mxu0
      %v2355 = vadd.f32 0.0, %v2354
      %v2356 = vpop.f32.mrb[0].mxu0
      %2357 = vmatprep.mubr.bf16.mxu0 0
      %2358 = vmatmul.mubr.bf16.gmra.mrb[0].mxu0 %v2229
      %v2359 = vpop.f32.mrb[0].mxu0
      %v2360 = vadd.f32 0.0, %v2359
      %v2361 = vpop.f32.mrb[0].mxu0
      %v2362 = vpop.f32.mrb[0].mxu0
      %v2363 = vadd.f32 0.0, %v2362
      %v2364 = vpop.f32.mrb[0].mxu0
      %2365 = vmatprep.mubr.bf16.mxu0 0
      %2366 = vmatmul.mubr.bf16.gmra.mrb[0].mxu0 %v2231
      %v2367 = vpop.f32.mrb[0].mxu0
      %v2368 = vadd.f32 0.0, %v2367
      %v2369 = vpop.f32.mrb[0].mxu0
      %v2370 = vpop.f32.mrb[0].mxu0
      %v2371 = vadd.f32 0.0, %v2370
      %v2372 = vpop.f32.mrb[0].mxu0
      %2373 = vmatprep.mubr.bf16.mxu0 0
      %2374 = vmatmul.mubr.bf16.gmra.mrb[0].mxu0 %v2233
      %v2375 = vpop.f32.mrb[0].mxu0
      %v2376 = vadd.f32 0.0, %v2375
      %v2377 = vpop.f32.mrb[0].mxu0
      %v2378 = vpop.f32.mrb[0].mxu0
      %v2379 = vadd.f32 0.0, %v2378
      %v2380 = vpop.f32.mrb[0].mxu0
      %2381 = vmatprep.mubr.bf16.mxu0 0
      %2382 = vmatmul.mubr.bf16.gmra.mrb[0].mxu0 %v2235
      %v2383 = vpop.f32.mrb[0].mxu0
      %v2384 = vadd.f32 0.0, %v2383
      %v2385 = vpop.f32.mrb[0].mxu0
      %v2386 = vpop.f32.mrb[0].mxu0
      %v2387 = vadd.f32 0.0, %v2386
      %v2388 = vpop.f32.mrb[0].mxu0
      %2389 = vmatprep.mubr.bf16.mxu0 0
      %2390 = vmatmul.mubr.bf16.gmra.mrb[0].mxu0 %v2237
      %v2391 = vpop.f32.mrb[0].mxu0
      %v2392 = vadd.f32 0.0, %v2391
      %v2393 = vpop.f32.mrb[0].mxu0
      %v2394 = vpop.f32.mrb[0].mxu0
      %v2395 = vadd.f32 0.0, %v2394
      %v2396 = vpop.f32.mrb[0].mxu0
      %2397 = vmatprep.mubr.bf16.mxu0 0
      %2398 = vmatmul.mubr.bf16.gmra.mrb[0].mxu0 %v2239
      %v2399 = vpop.f32.mrb[0].mxu0
      %v2400 = vadd.f32 0.0, %v2399
      %v2401 = vpop.f32.mrb[0].mxu0
      %v2402 = vpop.f32.mrb[0].mxu0
      %v2403 = vadd.f32 0.0, %v2402
      %v2404 = vpop.f32.mrb[0].mxu0
      %2405 = vdwg.mxu0
      %v2406 = vpack.c.bf16 %v2283, %v2280
      %v2407 = vpack.c.bf16 %v2291, %v2288
      %v2408 = vpack.c.bf16 %v2299, %v2296
      %v2409 = vpack.c.bf16 %v2307, %v2304
      %v2410 = vpack.c.bf16 %v2315, %v2312
      %v2411 = vpack.c.bf16 %v2323, %v2320
      %v2412 = vpack.c.bf16 %v2331, %v2328
      %v2413 = vpack.c.bf16 %v2339, %v2336
      %v2414 = vpack.c.bf16 %v2347, %v2344
      %v2415 = vpack.c.bf16 %v2355, %v2352
      %v2416 = vpack.c.bf16 %v2363, %v2360
      %v2417 = vpack.c.bf16 %v2371, %v2368
      %v2418 = vpack.c.bf16 %v2379, %v2376
      %v2419 = vpack.c.bf16 %v2387, %v2384
      %v2420 = vpack.c.bf16 %v2395, %v2392
      %v2421 = vpack.c.bf16 %v2403, %v2400
      %v2438 = vunpack.c.l.b16 %v2406
      %v2439 = vunpack.c.h.b16 %v2406
      %v2440 = vunpack.c.l.b16 %v2407
      %v2441 = vunpack.c.h.b16 %v2407
      %v2442 = vunpack.c.l.b16 %v2408
      %v2443 = vunpack.c.h.b16 %v2408
      %v2444 = vunpack.c.l.b16 %v2409
      %v2445 = vunpack.c.h.b16 %v2409
      %v2446 = vunpack.c.l.b16 %v2410
      %v2447 = vunpack.c.h.b16 %v2410
      %v2448 = vunpack.c.l.b16 %v2411
      %v2449 = vunpack.c.h.b16 %v2411
      %v2450 = vunpack.c.l.b16 %v2412
      %v2451 = vunpack.c.h.b16 %v2412
      %v2452 = vunpack.c.l.b16 %v2413
      %v2453 = vunpack.c.h.b16 %v2413
      %v2454 = vunpack.c.l.b16 %v2414
      %v2455 = vunpack.c.h.b16 %v2414
      %v2456 = vunpack.c.l.b16 %v2415
      %v2457 = vunpack.c.h.b16 %v2415
      %v2458 = vunpack.c.l.b16 %v2416
      %v2459 = vunpack.c.h.b16 %v2416
      %v2460 = vunpack.c.l.b16 %v2417
      %v2461 = vunpack.c.h.b16 %v2417
      %v2462 = vunpack.c.l.b16 %v2418
      %v2463 = vunpack.c.h.b16 %v2418
      %v2464 = vunpack.c.l.b16 %v2419
      %v2465 = vunpack.c.h.b16 %v2419
      %v2466 = vunpack.c.l.b16 %v2420
      %v2467 = vunpack.c.h.b16 %v2420
      %v2468 = vunpack.c.l.b16 %v2421
      %v2469 = vunpack.c.h.b16 %v2421
      %v2470 = vpack.c.b16 %v2438, %v2438
      %v2471 = vpack.c.b16 %v2439, %v2439
      %v2472 = vpack.c.b16 %v2440, %v2440
      %v2473 = vpack.c.b16 %v2441, %v2441
      %v2474 = vpack.c.b16 %v2442, %v2442
      %v2475 = vpack.c.b16 %v2443, %v2443
      %v2476 = vpack.c.b16 %v2444, %v2444
      %v2477 = vpack.c.b16 %v2445, %v2445
      %v2478 = vpack.c.b16 %v2446, %v2446
      %v2479 = vpack.c.b16 %v2447, %v2447
      %v2480 = vpack.c.b16 %v2448, %v2448
      %v2481 = vpack.c.b16 %v2449, %v2449
      %v2482 = vpack.c.b16 %v2450, %v2450
      %v2483 = vpack.c.b16 %v2451, %v2451
      %v2484 = vpack.c.b16 %v2452, %v2452
      %v2485 = vpack.c.b16 %v2453, %v2453
      %v2486 = vpack.c.b16 %v2454, %v2454
      %v2487 = vpack.c.b16 %v2455, %v2455
      %v2488 = vpack.c.b16 %v2456, %v2456
      %v2489 = vpack.c.b16 %v2457, %v2457
      %v2490 = vpack.c.b16 %v2458, %v2458
      %v2491 = vpack.c.b16 %v2459, %v2459
      %v2492 = vpack.c.b16 %v2460, %v2460
      %v2493 = vpack.c.b16 %v2461, %v2461
      %v2494 = vpack.c.b16 %v2462, %v2462
      %v2495 = vpack.c.b16 %v2463, %v2463
      %v2496 = vpack.c.b16 %v2464, %v2464
      %v2497 = vpack.c.b16 %v2465, %v2465
      %v2498 = vpack.c.b16 %v2466, %v2466
      %v2499 = vpack.c.b16 %v2467, %v2467
      %v2500 = vpack.c.b16 %v2468, %v2468
      %v2501 = vpack.c.b16 %v2469, %v2469
      %2534 = vst [vmem:[%s204] sm:$0xf] %v2470
      %2535 = vst [vmem:[%s204 + $0x4] sm:$0xf] %v2471
      %2536 = vst [vmem:[%s204 + $0x8] sm:$0xf] %v2472
      %2537 = vst [vmem:[%s204 + $0xc] sm:$0xf] %v2473
      %2538 = vst [vmem:[%s204 + $0x10] sm:$0xf] %v2474
      %2539 = vst [vmem:[%s204 + $0x14] sm:$0xf] %v2475
      %2540 = vst [vmem:[%s204 + $0x18] sm:$0xf] %v2476
      %2541 = vst [vmem:[%s204 + $0x1c] sm:$0xf] %v2477
      %2542 = vst [vmem:[%s204 + $0x20] sm:$0xf] %v2478
      %2543 = vst [vmem:[%s204 + $0x24] sm:$0xf] %v2479
      %2544 = vst [vmem:[%s204 + $0x28] sm:$0xf] %v2480
      %2545 = vst [vmem:[%s204 + $0x2c] sm:$0xf] %v2481
      %2546 = vst [vmem:[%s204 + $0x30] sm:$0xf] %v2482
      %2547 = vst [vmem:[%s204 + $0x34] sm:$0xf] %v2483
      %2548 = vst [vmem:[%s204 + $0x38] sm:$0xf] %v2484
      %2549 = vst [vmem:[%s204 + $0x3c] sm:$0xf] %v2485
      %2550 = vst [vmem:[%s204 + $0x40] sm:$0xf] %v2486
      %2551 = vst [vmem:[%s204 + $0x44] sm:$0xf] %v2487
      %2552 = vst [vmem:[%s204 + $0x48] sm:$0xf] %v2488
      %2553 = vst [vmem:[%s204 + $0x4c] sm:$0xf] %v2489
      %2554 = vst [vmem:[%s204 + $0x50] sm:$0xf] %v2490
      %2555 = vst [vmem:[%s204 + $0x54] sm:$0xf] %v2491
      %2556 = vst [vmem:[%s204 + $0x58] sm:$0xf] %v2492
      %2557 = vst [vmem:[%s204 + $0x5c] sm:$0xf] %v2493
      %2558 = vst [vmem:[%s204 + $0x60] sm:$0xf] %v2494
      %2559 = vst [vmem:[%s204 + $0x64] sm:$0xf] %v2495
      %2560 = vst [vmem:[%s204 + $0x68] sm:$0xf] %v2496
      %2561 = vst [vmem:[%s204 + $0x6c] sm:$0xf] %v2497
      %2562 = vst [vmem:[%s204 + $0x70] sm:$0xf] %v2498
      %2563 = vst [vmem:[%s204 + $0x74] sm:$0xf] %v2499
      %2564 = vst [vmem:[%s204 + $0x78] sm:$0xf] %v2500
      %2565 = vst [vmem:[%s204 + $0x7c] sm:$0xf] %v2501
      %v2566 = vunpack.c.l.bf16 %v2406
      %v2567 = vunpack.c.h.bf16 %v2406
      %v2568 = vunpack.c.l.bf16 %v2407
      %v2569 = vunpack.c.h.bf16 %v2407
      %v2570 = vunpack.c.l.bf16 %v2408
      %v2571 = vunpack.c.h.bf16 %v2408
      %v2572 = vunpack.c.l.bf16 %v2409
      %v2573 = vunpack.c.h.bf16 %v2409
      %v2574 = vunpack.c.l.bf16 %v2410
      %v2575 = vunpack.c.h.bf16 %v2410
      %v2576 = vunpack.c.l.bf16 %v2411
      %v2577 = vunpack.c.h.bf16 %v2411
      %v2578 = vunpack.c.l.bf16 %v2412
      %v2579 = vunpack.c.h.bf16 %v2412
      %v2580 = vunpack.c.l.bf16 %v2413
      %v2581 = vunpack.c.h.bf16 %v2413
      %v2582 = vunpack.c.l.bf16 %v2414
      %v2583 = vunpack.c.h.bf16 %v2414
      %v2584 = vunpack.c.l.bf16 %v2415
      %v2585 = vunpack.c.h.bf16 %v2415
      %v2586 = vunpack.c.l.bf16 %v2416
      %v2587 = vunpack.c.h.bf16 %v2416
      %v2588 = vunpack.c.l.bf16 %v2417
      %v2589 = vunpack.c.h.bf16 %v2417
      %v2590 = vunpack.c.l.bf16 %v2418
      %v2591 = vunpack.c.h.bf16 %v2418
      %v2592 = vunpack.c.l.bf16 %v2419
      %v2593 = vunpack.c.h.bf16 %v2419
      %v2594 = vunpack.c.l.bf16 %v2420
      %v2595 = vunpack.c.h.bf16 %v2420
      %v2596 = vunpack.c.l.bf16 %v2421
      %v2597 = vunpack.c.h.bf16 %v2421
      %v2598 = vadd.f32 %v2566, %v2567
      %v2599 = vadd.f32 %v2598, %v2568
      %v2600 = vadd.f32 %v2599, %v2569
      %v2601 = vadd.f32 %v2600, %v2570
      %v2602 = vadd.f32 %v2601, %v2571
      %v2603 = vadd.f32 %v2602, %v2572
      %v2604 = vadd.f32 %v2603, %v2573
      %v2605 = vadd.f32 %v2604, %v2574
      %v2606 = vadd.f32 %v2605, %v2575
      %v2607 = vadd.f32 %v2606, %v2576
      %v2608 = vadd.f32 %v2607, %v2577
      %v2609 = vadd.f32 %v2608, %v2578
      %v2610 = vadd.f32 %v2609, %v2579
      %v2611 = vadd.f32 %v2610, %v2580
      %v2612 = vadd.f32 %v2611, %v2581
      %v2613 = vadd.f32 %v2612, %v2582
      %v2614 = vadd.f32 %v2613, %v2583
      %v2615 = vadd.f32 %v2614, %v2584
      %v2616 = vadd.f32 %v2615, %v2585
      %v2617 = vadd.f32 %v2616, %v2586
      %v2618 = vadd.f32 %v2617, %v2587
      %v2619 = vadd.f32 %v2618, %v2588
      %v2620 = vadd.f32 %v2619, %v2589
      %v2621 = vadd.f32 %v2620, %v2590
      %v2622 = vadd.f32 %v2621, %v2591
      %v2623 = vadd.f32 %v2622, %v2592
      %v2624 = vadd.f32 %v2623, %v2593
      %v2625 = vadd.f32 %v2624, %v2594
      %v2626 = vadd.f32 %v2625, %v2595
      %v2627 = vadd.f32 %v2626, %v2596
      %v2628 = vadd.f32 %v2627, %v2597
      %v2629 = vrot.slane %v2628, 4
      %v2630 = vadd.f32 %v2628, %v2629
      %v2631 = vrot.slane %v2630, 2
      %v2632 = vadd.f32 %v2630, %v2631
      %v2633 = vrot.slane %v2632, 1
      %v2634 = vadd.f32 %v2632, %v2633
      %v2635 = vmul.f32 %v2566, %v2566
      %v2636 = vmul.f32 %v2567, %v2567
      %v2637 = vmul.f32 %v2568, %v2568
      %v2638 = vmul.f32 %v2569, %v2569
      %v2639 = vmul.f32 %v2570, %v2570
      %v2640 = vmul.f32 %v2571, %v2571
      %v2641 = vmul.f32 %v2572, %v2572
      %v2642 = vmul.f32 %v2573, %v2573
      %v2643 = vmul.f32 %v2574, %v2574
      %v2644 = vmul.f32 %v2575, %v2575
      %v2645 = vmul.f32 %v2576, %v2576
      %v2646 = vmul.f32 %v2577, %v2577
      %v2647 = vmul.f32 %v2578, %v2578
      %v2648 = vmul.f32 %v2579, %v2579
      %v2649 = vmul.f32 %v2580, %v2580
      %v2650 = vmul.f32 %v2581, %v2581
      %v2651 = vmul.f32 %v2582, %v2582
      %v2652 = vmul.f32 %v2583, %v2583
      %v2653 = vmul.f32 %v2584, %v2584
      %v2654 = vmul.f32 %v2585, %v2585
      %v2655 = vmul.f32 %v2586, %v2586
      %v2656 = vmul.f32 %v2587, %v2587
      %v2657 = vmul.f32 %v2588, %v2588
      %v2658 = vmul.f32 %v2589, %v2589
      %v2659 = vmul.f32 %v2590, %v2590
      %v2660 = vmul.f32 %v2591, %v2591
      %v2661 = vmul.f32 %v2592, %v2592
      %v2662 = vmul.f32 %v2593, %v2593
      %v2663 = vmul.f32 %v2594, %v2594
      %v2664 = vmul.f32 %v2595, %v2595
      %v2665 = vmul.f32 %v2596, %v2596
      %v2666 = vmul.f32 %v2597, %v2597
      %v2667 = vadd.f32 %v2635, %v2636
      %v2668 = vadd.f32 %v2667, %v2637
      %v2669 = vadd.f32 %v2668, %v2638
      %v2670 = vadd.f32 %v2669, %v2639
      %v2671 = vadd.f32 %v2670, %v2640
      %v2672 = vadd.f32 %v2671, %v2641
      %v2673 = vadd.f32 %v2672, %v2642
      %v2674 = vadd.f32 %v2673, %v2643
      %v2675 = vadd.f32 %v2674, %v2644
      %v2676 = vadd.f32 %v2675, %v2645
      %v2677 = vadd.f32 %v2676, %v2646
      %v2678 = vadd.f32 %v2677, %v2647
      %v2679 = vadd.f32 %v2678, %v2648
      %v2680 = vadd.f32 %v2679, %v2649
      %v2681 = vadd.f32 %v2680, %v2650
      %v2682 = vadd.f32 %v2681, %v2651
      %v2683 = vadd.f32 %v2682, %v2652
      %v2684 = vadd.f32 %v2683, %v2653
      %v2685 = vadd.f32 %v2684, %v2654
      %v2686 = vadd.f32 %v2685, %v2655
      %v2687 = vadd.f32 %v2686, %v2656
      %v2688 = vadd.f32 %v2687, %v2657
      %v2689 = vadd.f32 %v2688, %v2658
      %v2690 = vadd.f32 %v2689, %v2659
      %v2691 = vadd.f32 %v2690, %v2660
      %v2692 = vadd.f32 %v2691, %v2661
      %v2693 = vadd.f32 %v2692, %v2662
      %v2694 = vadd.f32 %v2693, %v2663
      %v2695 = vadd.f32 %v2694, %v2664
      %v2696 = vadd.f32 %v2695, %v2665
      %v2697 = vadd.f32 %v2696, %v2666
      %v2698 = vrot.slane %v2697, 4
      %v2699 = vadd.f32 %v2697, %v2698
      %v2700 = vrot.slane %v2699, 2
      %v2701 = vadd.f32 %v2699, %v2700
      %v2702 = vrot.slane %v2701, 1
      %v2703 = vadd.f32 %v2701, %v2702
      %vm2704 = vcmask 1040384
      %v2705 = vsel %vm2704, %v2634, %v2703
      %2706 = vst [vmem:[%s212] sm:$0x3] %v2705
      %s2707 = smul.u32 32, %s20
      %p2708 = scmp.lt.s32.totalorder %s19, 1
      %s2709 = scalar_select %p2708, %s19, 1
      %p2710 = scmp.lt.s32.totalorder %s2707, 31
      %s2711 = scalar_select %p2710, %s2707, 31
      %s2712 = smul.addr %s2709, 32
      %s2713 = sadd.s32 %s2711, %s2712
      %s2714 = smul.addr %s2713, 4
      %s2715 = scalar_lea.vmem %s2, %s2714
      %p2716 = scmp.lt.s32.totalorder %s19, 1
      %s2717 = scalar_select %p2716, %s19, 1
      %p2718 = scmp.lt.s32.totalorder %s20, 0
      %s2719 = scalar_select %p2718, %s20, 0
      %s2720 = sadd.s32 %s2719, %s2717
      %s2721 = smul.addr %s2720, 2
      %s2722 = scalar_lea.vmem %s3, %s2721
      // Predicated region
      $region29: #{conv_block_forward.2} parent=27 // pred_check
        %p2723 = pneg %p94
      $region30: #{conv_block_forward.2} parent=27 // pred_check_branch
        %2725 = sbr.rel (%p2723) target = $region32
      $region31: #{conv_block_forward.2} parent=27 // pred_region
        %s2726 = smul.u32 32, %s20
      $region32: #{conv_block_forward.2} parent=27 // pred_fallthru
        _
      // Predicated region
      $region33: #{conv_block_forward.2} parent=27 // pred_check
        %p2727 = pneg %p122
      $region34: #{conv_block_forward.2} parent=27 // pred_check_branch
        %2729 = sbr.rel (%p2727) target = $region36
      $region35: #{conv_block_forward.2} parent=27 // pred_region
        _
      $region36: #{conv_block_forward.2} parent=27 // pred_fallthru
        _
    $region28: #{conv_block_forward.2} parent=5 // pred_fallthru
      _
    %p2730 = scmp.le.s32.totalorder 2, %s10
    // Predicated region
    $region37: #{conv_block_forward.2} parent=5 // pred_check
      %p2731 = pneg %p2730
    $region38: #{conv_block_forward.2} parent=5 // pred_check_branch
      %2733 = sbr.rel (%p2731) target = $region40
    $region39: #{conv_block_forward.2} parent=5 // pred_region
      %s2734 = ssub.s32 %s10, 2
      // Predicated region
      $region41: #{conv_block_forward.2} parent=39 // pred_check
        %p2735 = pneg %p100
      $region42: #{conv_block_forward.2} parent=39 // pred_check_branch
        %2737 = sbr.rel (%p2735) target = $region44
      $region43: #{conv_block_forward.2} parent=39 // pred_region
        %s2738 = smul.u32 32, %s22
        %p2739 = scmp.lt.s32.totalorder %s21, 1
        %s2740 = scalar_select %p2739, %s21, 1
        %p2741 = scmp.lt.s32.totalorder %s2738, 31
        %s2742 = scalar_select %p2741, %s2738, 31
        %s2743 = smul.addr %s2740, 32
        %s2744 = sadd.s32 %s2742, %s2743
        %s2745 = smul.addr %s2744, 4
        %s2746 = scalar_lea.vmem %s2, %s2745
      $region44: #{conv_block_forward.2} parent=39 // pred_fallthru
        _
      // Predicated region
      $region45: #{conv_block_forward.2} parent=39 // pred_check
        %p2747 = pneg %p128
      $region46: #{conv_block_forward.2} parent=39 // pred_check_branch
        %2749 = sbr.rel (%p2747) target = $region48
      $region47: #{conv_block_forward.2} parent=39 // pred_region
        %p2750 = scmp.lt.s32.totalorder %s21, 1
        %s2751 = scalar_select %p2750, %s21, 1
        %p2752 = scmp.lt.s32.totalorder %s22, 0
        %s2753 = scalar_select %p2752, %s22, 0
        %s2754 = sadd.s32 %s2753, %s2751
        %s2755 = smul.addr %s2754, 2
        %s2756 = scalar_lea.vmem %s3, %s2755
      $region48: #{conv_block_forward.2} parent=39 // pred_fallthru
        _
    $region40: #{conv_block_forward.2} parent=5 // pred_fallthru
      _
  $region6: #{conv_block_forward.2} parent=0 // loop_footer
    %s14 = sadd.s32 1, %s10
  $region7: #{conv_block_forward.2} parent=0 // loop_footer_branch
    %9 = sbr.rel target = $region3
  $region8: #{conv_block_forward.2} parent=0 // loop_exit
    _

</llo_original>
